<compile_context>
chip_gen: v7x
topology: tpu7x:2x2x1
jax: 0.10.0
libtpu: 0.0.40
codegen_flags: <defaults>
</compile_context>

<pallas_src>
import numpy as np
import jax
import jax.numpy as jnp
from jax.experimental import pallas as pl
from jax.experimental.pallas import tpu as pltpu


# ---------------------------------------------------------------------------
# Tree node (mirrors FormulaTreeNode from the reference)
# ---------------------------------------------------------------------------
class FormulaTreeNode:
    def __init__(self, embedding_index, children=()):
        self.embedding_index = embedding_index
        self.children = list(children)


# ---------------------------------------------------------------------------
# Whole-tree kernel: grid = levels, states resident in VMEM scratch.
# ---------------------------------------------------------------------------
def _tree_kernel(
    # scalar prefetch (SMEM), flattened (n_levels * Wt,)
    emb_idx_ref, l_rows_ref, r_rows_ref,
    # VMEM-resident inputs (constant block index across the grid)
    emb_ref, wx_ref, ul_ref, ur_ref, b_ref,
    fc1w_ref, fc1b_ref, fc2w_ref, fc2b_ref,
    # outputs (written only at the final grid step)
    logit_ref, hroot_ref, croot_ref,
    # scratch
    h_states, c_states, x_buf, hl_buf, hr_buf, cl_buf, cr_buf,
):
    Wt = x_buf.shape[0]          # level tile (multiple of 8)
    Hp = hl_buf.shape[-1]        # lane-padded hidden width (multiple of 128)
    lvl = pl.program_id(0)
    n_levels = pl.num_programs(0)

    # Zero the "null child" state tile (rows [0, Wt)) once, before level 0 reads it.
    @pl.when(lvl == 0)
    def _():
        h_states[0:Wt, :] = jnp.zeros((Wt, Hp), jnp.float32)
        c_states[0:Wt, :] = jnp.zeros((Wt, Hp), jnp.float32)

    # ---- Gather this level's inputs (unrolled over the level tile) ----------
    sched_base = lvl * Wt
    for s in range(Wt):
        e = emb_idx_ref[sched_base + s]
        lr = l_rows_ref[sched_base + s]
        rr = r_rows_ref[sched_base + s]
        x_buf[pl.ds(s, 1), :] = emb_ref[pl.ds(e, 1), :].astype(jnp.float32)
        hl_buf[pl.ds(s, 1), :] = h_states[pl.ds(lr, 1), :]
        cl_buf[pl.ds(s, 1), :] = c_states[pl.ds(lr, 1), :]
        hr_buf[pl.ds(s, 1), :] = h_states[pl.ds(rr, 1), :]
        cr_buf[pl.ds(s, 1), :] = c_states[pl.ds(rr, 1), :]

    # ---- Fused cell: three MXU matmuls into one f32 accumulator -------------
    x = x_buf[...]
    h_l = hl_buf[...]
    h_r = hr_buf[...]
    z = (jnp.dot(x, wx_ref[...], preferred_element_type=jnp.float32)
         + jnp.dot(h_l, ul_ref[...], preferred_element_type=jnp.float32)
         + jnp.dot(h_r, ur_ref[...], preferred_element_type=jnp.float32)
         + b_ref[...])

    # sigmoid over the whole (Wt, 5*Hp) slab == sigmoid(iou) | sigmoid(f);
    # each gate occupies one 128-lane-aligned column block.
    s_all = jax.nn.sigmoid(z)
    i_g = s_all[:, 0 * Hp:1 * Hp]
    o_g = s_all[:, 1 * Hp:2 * Hp]
    u_g = jnp.tanh(s_all[:, 2 * Hp:3 * Hp])     # matches reference: tanh(sigmoid(u))
    fl_g = s_all[:, 3 * Hp:4 * Hp]
    fr_g = s_all[:, 4 * Hp:5 * Hp]

    c = i_g * u_g + fl_g * cl_buf[...] + fr_g * cr_buf[...]
    h = o_g * jnp.tanh(c)

    # ---- Scatter the whole level back (contiguous, 8-aligned store) ---------
    out_base = pl.multiple_of((lvl + 1) * Wt, 8)
    h_states[pl.ds(out_base, Wt), :] = h
    c_states[pl.ds(out_base, Wt), :] = c

    # ---- Classifier head fused into the final grid step ---------------------
    @pl.when(lvl == n_levels - 1)
    def _():
        h_root = h[0:1, :]                                      # root = slot 0 of last level
        z1 = jnp.dot(h_root, fc1w_ref[...], preferred_element_type=jnp.float32) + fc1b_ref[...]
        z1 = jnp.maximum(z1, 0.0)
        # TODO(synk): nn.Dropout(p=0.4) is identity in eval mode; a training-mode
        # path would use pltpu.prng_seed / pltpu.prng_random_bits here.
        logit = jnp.sum(z1 * fc2w_ref[...], axis=-1, keepdims=True) + fc2b_ref[...]
        logit_ref[...] = logit.astype(logit_ref.dtype)
        hroot_ref[...] = h_root.astype(hroot_ref.dtype)
        croot_ref[...] = c[0:1, :].astype(croot_ref.dtype)


# ---------------------------------------------------------------------------
# Host-side level schedule (Python tree traversal -> SMEM scalar tables)
# ---------------------------------------------------------------------------
def _build_schedule(root):
    nodes = []      # (embedding_index, child node ids)
    depths = []

    def visit(n):
        ch = [visit(c) for c in n.children]
        nid = len(nodes)
        if len(ch) > 2:
            raise ValueError(f"Unexpected number of children: {len(ch)}")
        d = 0 if not ch else max(depths[c] for c in ch) + 1
        nodes.append((n.embedding_index, ch))
        depths.append(d)
        return nid

    root_id = visit(root)
    n_levels = max(depths) + 1
    levels = [[] for _ in range(n_levels)]
    for nid, d in enumerate(depths):
        levels[d].append(nid)
    assert levels[-1] == [root_id], "root must be the unique node of the last level"

    width = max(len(lv) for lv in levels)
    Wt = -(-width // 8) * 8                      # whole-level tile, sublane aligned

    # state rows: rows [0, Wt) = zero state; level l slot s -> row (l+1)*Wt + s
    row_of = {}
    for l, lv in enumerate(levels):
        for s, nid in enumerate(lv):
            row_of[nid] = (l + 1) * Wt + s

    emb_idx = np.zeros((n_levels, Wt), np.int32)
    l_rows = np.zeros((n_levels, Wt), np.int32)
    r_rows = np.zeros((n_levels, Wt), np.int32)
    for l, lv in enumerate(levels):
        for s, nid in enumerate(lv):
            e, ch = nodes[nid]
            emb_idx[l, s] = e
            if len(ch) == 0:
                lr = rr = 0
            elif len(ch) == 1:
                lr = rr = row_of[ch[0]]
            else:
                lr, rr = row_of[ch[0]], row_of[ch[1]]
            l_rows[l, s] = lr
            r_rows[l, s] = rr

    return emb_idx.reshape(-1), l_rows.reshape(-1), r_rows.reshape(-1), n_levels, Wt


# ---------------------------------------------------------------------------
# Wrapper: one pallas_call for the whole tree (encoder + classifier head)
# ---------------------------------------------------------------------------
def _run_tree_kernel(params, root):
    emb_idx, l_rows, r_rows, n_levels, Wt = _build_schedule(root)

    emb = params["emb_pad"]
    w_x, u_l, u_r, b = params["w_x"], params["u_l"], params["u_r"], params["b_fused"]
    fc1_w, fc1_b = params["fc1_w_pad"], params["fc1_b"]
    fc2_w, fc2_b = params["fc2_w_row"], params["fc2_b"]

    Dp = emb.shape[1]
    Hp = u_l.shape[0]
    dtype = emb.dtype
    n_rows = (n_levels + 1) * Wt

    def const2d(shape):
        return pl.BlockSpec(shape, lambda l, ei, lr, rr: (0, 0))

    grid_spec = pltpu.PrefetchScalarGridSpec(
        num_scalar_prefetch=3,
        grid=(n_levels,),
        in_specs=[
            const2d(emb.shape),      # embedding table, VMEM-resident
            const2d(w_x.shape),
            const2d(u_l.shape),
            const2d(u_r.shape),
            const2d(b.shape),
            const2d(fc1_w.shape),
            const2d(fc1_b.shape),
            const2d(fc2_w.shape),
            const2d(fc2_b.shape),
        ],
        out_specs=[
            const2d((1, 1)),
            const2d((1, Hp)),
            const2d((1, Hp)),
        ],
        scratch_shapes=[
            pltpu.VMEM((n_rows, Hp), jnp.float32),   # h states (persistent)
            pltpu.VMEM((n_rows, Hp), jnp.float32),   # c states (persistent)
            pltpu.VMEM((Wt, Dp), jnp.float32),       # x staging
            pltpu.VMEM((Wt, Hp), jnp.float32),       # h_l staging
            pltpu.VMEM((Wt, Hp), jnp.float32),       # h_r staging
            pltpu.VMEM((Wt, Hp), jnp.float32),       # c_l staging
            pltpu.VMEM((Wt, Hp), jnp.float32),       # c_r staging
        ],
    )

    logit, h_root, c_root = pl.pallas_call(
        _tree_kernel,
        out_shape=(
            jax.ShapeDtypeStruct((1, 1), dtype),
            jax.ShapeDtypeStruct((1, Hp), dtype),
            jax.ShapeDtypeStruct((1, Hp), dtype),
        ),
        grid_spec=grid_spec,
        # Level axis has a strict sequential dependency -> "arbitrary" (no megacore split).
        compiler_params=pltpu.CompilerParams(dimension_semantics=("arbitrary",)),
    )(
        jnp.asarray(emb_idx), jnp.asarray(l_rows), jnp.asarray(r_rows),
        emb, w_x, u_l, u_r, b, fc1_w, fc1_b, fc2_w, fc2_b,
    )
    return logit[:, 0], h_root, c_root


def tree_lstm_classifier_forward(params, root, hidden_size):
    logit, _, _ = _run_tree_kernel(params, root)
    return logit


def tree_lstm_encode(params, root, hidden_size):
    _, h_root, c_root = _run_tree_kernel(params, root)
    return h_root[:, :hidden_size], c_root[:, :hidden_size]


# ---------------------------------------------------------------------------
# Parameter init (mirrors nn.Linear / nn.Embedding) + lane-aligned packing
# ---------------------------------------------------------------------------
def init_params(key, vocab_size, input_size, hidden_size, fc_size, dtype=jnp.float32):
    ks = jax.random.split(key, 13)
    H = hidden_size
    Hp = -(-H // 128) * 128            # lane-padded gate / state width
    Dp = -(-input_size // 128) * 128   # lane-padded embedding width

    def lin(kw, kb, fan_in, fan_out):
        bound = float(fan_in) ** -0.5
        w = jax.random.uniform(kw, (fan_in, fan_out), dtype, -bound, bound)
        b = jax.random.uniform(kb, (1, fan_out), dtype, -bound, bound)
        return w, b

    emb = jax.random.normal(ks[0], (vocab_size, input_size), dtype)
    emb = emb.at[0].set(0.0)                                     # padding_idx=0

    w_iou, b_iou = lin(ks[1], ks[2], input_size, 3 * H)
    u_iou, bu_iou = lin(ks[3], ks[4], 2 * H, 3 * H)
    w_f, b_f = lin(ks[5], ks[6], input_size, 2 * H)
    u_f, bu_f = lin(ks[7], ks[8], 2 * H, 2 * H)

    # Column layout of the fused weights: 5 gate blocks [i | o | u | f_l | f_r],
    # each Hp lanes wide with the real gate in lanes [0, H).  Padded rows/cols
    # are zero so the extra lanes never contribute.
    def pack_cols(src_iou, src_f):
        rows = src_iou.shape[0]
        out = jnp.zeros((rows, 5 * Hp), dtype)
        for g in range(3):
            out = out.at[:, g * Hp:g * Hp + H].set(src_iou[:, g * H:(g + 1) * H])
        for g in range(2):
            out = out.at[:, (3 + g) * Hp:(3 + g) * Hp + H].set(src_f[:, g * H:(g + 1) * H])
        return out

    w_x = jnp.zeros((Dp, 5 * Hp), dtype).at[:input_size].set(pack_cols(w_iou, w_f))
    u_l = jnp.zeros((Hp, 5 * Hp), dtype).at[:H].set(pack_cols(u_iou[:H], u_f[:H]))
    u_r = jnp.zeros((Hp, 5 * Hp), dtype).at[:H].set(pack_cols(u_iou[H:], u_f[H:]))
    b_fused = pack_cols(b_iou + bu_iou, b_f + bu_f)              # (1, 5*Hp)

    emb_pad = jnp.zeros((vocab_size, Dp), dtype).at[:, :input_size].set(emb)

    fc1_w, fc1_b = lin(ks[9], ks[10], H, fc_size)
    fc2_w, fc2_b = lin(ks[11], ks[12], fc_size, 1)               # fc2_w: (FC, 1)
    fc1_w_pad = jnp.zeros((Hp, fc_size), dtype).at[:H].set(fc1_w)
    fc2_w_row = fc2_w.T                                          # (1, FC)

    return dict(
        # unpacked (used by the pure-JAX reference)
        embedding=emb,
        w_iou=w_iou, b_iou=b_iou, u_iou=u_iou, bu_iou=bu_iou,
        w_f=w_f, b_f=b_f, u_f=u_f, bu_f=bu_f,
        fc1_w=fc1_w, fc1_b=fc1_b, fc2_w=fc2_w, fc2_b=fc2_b,
        # packed, lane-aligned (used by the kernel)
        emb_pad=emb_pad, w_x=w_x, u_l=u_l, u_r=u_r, b_fused=b_fused,
        fc1_w_pad=fc1_w_pad, fc2_w_row=fc2_w_row,
    )


# ---------------------------------------------------------------------------
# Pure-JAX reference (mirrors the PyTorch module exactly)
# ---------------------------------------------------------------------------
def _reference_cell(params, x, left_state, right_state):
    h_l, c_l = left_state
    h_r, c_r = right_state
    h_cat = jnp.concatenate([h_l, h_r], axis=1)
    H = c_l.shape[1]
    iou = x @ params["w_iou"] + params["b_iou"] + h_cat @ params["u_iou"] + params["bu_iou"]
    s = jax.nn.sigmoid(iou)
    i, o, u = s[:, :H], s[:, H:2 * H], jnp.tanh(s[:, 2 * H:])
    f = x @ params["w_f"] + params["b_f"] + h_cat @ params["u_f"] + params["bu_f"]
    sf = jax.nn.sigmoid(f)
    f_l, f_r = sf[:, :H], sf[:, H:]
    c = i * u + f_l * c_l + f_r * c_r
    h = o * jnp.tanh(c)
    return h, c


def _reference_encoder(params, node, hidden_size):
    x = params["embedding"][jnp.array([node.embedding_index])]
    if len(node.children) == 0:
        zero = (jnp.zeros((1, hidden_size), x.dtype), jnp.zeros((1, hidden_size), x.dtype))
        return _reference_cell(params, x, zero, zero)
    elif len(node.children) == 1:
        cs = _reference_encoder(params, node.children[0], hidden_size)
        return _reference_cell(params, x, cs, cs)
    else:
        ls = _reference_encoder(params, node.children[0], hidden_size)
        rs = _reference_encoder(params, node.children[1], hidden_size)
        return _reference_cell(params, x, ls, rs)


def _reference_classifier(params, root, hidden_size):
    h, _ = _reference_encoder(params, root, hidden_size)
    z = jnp.maximum(h @ params["fc1_w"] + params["fc1_b"], 0.0)
    out = z @ params["fc2_w"] + params["fc2_b"]          # dropout = identity (eval)
    return out[:, 0]


# ---------------------------------------------------------------------------
if __name__ == "__main__":
    VOCAB, D_IN, H, FC = 16, 64, 32, 64

    params = init_params(jax.random.PRNGKey(0), VOCAB, D_IN, H, FC)

    # Small deterministic formula tree (exercises leaf / unary / binary nodes):
    #          root(1)
    #         /       \
    #      A(7)       B(2)      (B is unary)
    #      /  \         |
    #   L(3)  L(4)     C(8)
    #                  /  \
    #               L(5)  L(6)
    leaf = lambda i: FormulaTreeNode(i)
    tree = FormulaTreeNode(1, [
        FormulaTreeNode(7, [leaf(3), leaf(4)]),
        FormulaTreeNode(2, [FormulaTreeNode(8, [leaf(5), leaf(6)])]),
    ])

    logit = tree_lstm_classifier_forward(params, tree, H)
    jax.block_until_ready(logit)

    # Correctness vs pure-JAX reference of the full module forward.
    logit_ref = _reference_classifier(params, tree, H)
    assert logit.shape == (1,)
    assert jnp.allclose(logit, logit_ref, atol=1e-4, rtol=1e-4), (logit, logit_ref)

    h, c = tree_lstm_encode(params, tree, H)
    h_ref, c_ref = _reference_encoder(params, tree, H)
    assert jnp.allclose(h, h_ref, atol=1e-4, rtol=1e-4)
    assert jnp.allclose(c, c_ref, atol=1e-4, rtol=1e-4)

    print("KERNEL_OK")
</pallas_src>

<mosaic_0001>
module attributes {stable_mosaic.version = 11 : i64} {
  func.func @_tree_kernel(%arg0: i32, %arg1: memref<32xi32, #tpu.memory_space<smem>>, %arg2: memref<32xi32, #tpu.memory_space<smem>>, %arg3: memref<32xi32, #tpu.memory_space<smem>>, %arg4: memref<16x128xf32, #tpu.memory_space<vmem>>, %arg5: memref<128x640xf32, #tpu.memory_space<vmem>>, %arg6: memref<128x640xf32, #tpu.memory_space<vmem>>, %arg7: memref<128x640xf32, #tpu.memory_space<vmem>>, %arg8: memref<1x640xf32, #tpu.memory_space<vmem>>, %arg9: memref<128x64xf32, #tpu.memory_space<vmem>>, %arg10: memref<1x64xf32, #tpu.memory_space<vmem>>, %arg11: memref<1x64xf32, #tpu.memory_space<vmem>>, %arg12: memref<1x1xf32, #tpu.memory_space<vmem>>, %arg13: memref<1x1xf32, #tpu.memory_space<vmem>>, %arg14: memref<1x128xf32, #tpu.memory_space<vmem>>, %arg15: memref<1x128xf32, #tpu.memory_space<vmem>>, %arg16: memref<40x128xf32, #tpu.memory_space<vmem>>, %arg17: memref<40x128xf32, #tpu.memory_space<vmem>>, %arg18: memref<8x128xf32, #tpu.memory_space<vmem>>, %arg19: memref<8x128xf32, #tpu.memory_space<vmem>>, %arg20: memref<8x128xf32, #tpu.memory_space<vmem>>, %arg21: memref<8x128xf32, #tpu.memory_space<vmem>>, %arg22: memref<8x128xf32, #tpu.memory_space<vmem>>) attributes {dimension_semantics = [#tpu.dimension_semantics<arbitrary>], iteration_bounds = array<i64: 4>, scalar_prefetch = 3 : i64, scratch_operands = 7 : i64, tpu.core_type = #tpu.core_type<tc>, window_params = [{pipeline_mode = #tpu.pipeline_mode<synchronous>, transform_indices = @transform_0, window_bounds = array<i64: 16, 128>}, {pipeline_mode = #tpu.pipeline_mode<synchronous>, transform_indices = @transform_1, window_bounds = array<i64: 128, 640>}, {pipeline_mode = #tpu.pipeline_mode<synchronous>, transform_indices = @transform_2, window_bounds = array<i64: 128, 640>}, {pipeline_mode = #tpu.pipeline_mode<synchronous>, transform_indices = @transform_3, window_bounds = array<i64: 128, 640>}, {pipeline_mode = #tpu.pipeline_mode<synchronous>, transform_indices = @transform_4, window_bounds = array<i64: 1, 640>}, {pipeline_mode = #tpu.pipeline_mode<synchronous>, transform_indices = @transform_5, window_bounds = array<i64: 128, 64>}, {pipeline_mode = #tpu.pipeline_mode<synchronous>, transform_indices = @transform_6, window_bounds = array<i64: 1, 64>}, {pipeline_mode = #tpu.pipeline_mode<synchronous>, transform_indices = @transform_7, window_bounds = array<i64: 1, 64>}, {pipeline_mode = #tpu.pipeline_mode<synchronous>, transform_indices = @transform_8, window_bounds = array<i64: 1, 1>}, {pipeline_mode = #tpu.pipeline_mode<synchronous>, transform_indices = @transform_9, window_bounds = array<i64: 1, 1>}, {pipeline_mode = #tpu.pipeline_mode<synchronous>, transform_indices = @transform_10, window_bounds = array<i64: 1, 128>}, {pipeline_mode = #tpu.pipeline_mode<synchronous>, transform_indices = @transform_11, window_bounds = array<i64: 1, 128>}]} {
    %c0_i32 = arith.constant 0 : i32
    %0 = arith.cmpi eq, %arg0, %c0_i32 : i32
    %1 = arith.extui %0 : i1 to i32
    %c0_i32_0 = arith.constant 0 : i32
    %2 = arith.cmpi ne, %1, %c0_i32_0 : i32
    scf.if %2 {
      %cst_157 = arith.constant 0.000000e+00 : f32
      %240 = vector.broadcast %cst_157 : f32 to vector<8x128xf32>
      %c0_158 = arith.constant 0 : index
      %c0_159 = arith.constant 0 : index
      %241 = vector.load %arg16[%c0_158, %c0_159] : memref<40x128xf32, #tpu.memory_space<vmem>>, vector<8x128xf32>
      tpu.vector_store %arg16[%c0_158, %c0_159], %240 {strides = array<i32>} : memref<40x128xf32, #tpu.memory_space<vmem>>, vector<8x128xf32>,
      %cst_160 = arith.constant 0.000000e+00 : f32
      %242 = vector.broadcast %cst_160 : f32 to vector<8x128xf32>
      %c0_161 = arith.constant 0 : index
      %c0_162 = arith.constant 0 : index
      %243 = vector.load %arg17[%c0_161, %c0_162] : memref<40x128xf32, #tpu.memory_space<vmem>>, vector<8x128xf32>
      tpu.vector_store %arg17[%c0_161, %c0_162], %242 {strides = array<i32>} : memref<40x128xf32, #tpu.memory_space<vmem>>, vector<8x128xf32>,
    } else {
    }
    %c8_i32 = arith.constant 8 : i32
    %3 = arith.muli %arg0, %c8_i32 : i32
    %c0_i32_1 = arith.constant 0 : i32
    %4 = arith.addi %3, %c0_i32_1 : i32
    %5 = arith.index_cast %4 : i32 to index
    %6 = memref.load %arg1[%5] : memref<32xi32, #tpu.memory_space<smem>>
    %c0_i32_2 = arith.constant 0 : i32
    %7 = arith.addi %3, %c0_i32_2 : i32
    %8 = arith.index_cast %7 : i32 to index
    %9 = memref.load %arg2[%8] : memref<32xi32, #tpu.memory_space<smem>>
    %c0_i32_3 = arith.constant 0 : i32
    %10 = arith.addi %3, %c0_i32_3 : i32
    %11 = arith.index_cast %10 : i32 to index
    %12 = memref.load %arg3[%11] : memref<32xi32, #tpu.memory_space<smem>>
    %13 = arith.index_cast %6 : i32 to index
    %c0 = arith.constant 0 : index
    %14 = vector.load %arg4[%13, %c0] : memref<16x128xf32, #tpu.memory_space<vmem>>, vector<1x128xf32>
    %c0_4 = arith.constant 0 : index
    %c0_5 = arith.constant 0 : index
    %15 = vector.load %arg18[%c0_4, %c0_5] : memref<8x128xf32, #tpu.memory_space<vmem>>, vector<1x128xf32>
    tpu.vector_store %arg18[%c0_4, %c0_5], %14 {strides = array<i32>} : memref<8x128xf32, #tpu.memory_space<vmem>>, vector<1x128xf32>,
    %16 = arith.index_cast %9 : i32 to index
    %c0_6 = arith.constant 0 : index
    %17 = vector.load %arg16[%16, %c0_6] : memref<40x128xf32, #tpu.memory_space<vmem>>, vector<1x128xf32>
    %c0_7 = arith.constant 0 : index
    %c0_8 = arith.constant 0 : index
    %18 = vector.load %arg19[%c0_7, %c0_8] : memref<8x128xf32, #tpu.memory_space<vmem>>, vector<1x128xf32>
    tpu.vector_store %arg19[%c0_7, %c0_8], %17 {strides = array<i32>} : memref<8x128xf32, #tpu.memory_space<vmem>>, vector<1x128xf32>,
    %19 = arith.index_cast %9 : i32 to index
    %c0_9 = arith.constant 0 : index
    %20 = vector.load %arg17[%19, %c0_9] : memref<40x128xf32, #tpu.memory_space<vmem>>, vector<1x128xf32>
    %c0_10 = arith.constant 0 : index
    %c0_11 = arith.constant 0 : index
    %21 = vector.load %arg21[%c0_10, %c0_11] : memref<8x128xf32, #tpu.memory_space<vmem>>, vector<1x128xf32>
    tpu.vector_store %arg21[%c0_10, %c0_11], %20 {strides = array<i32>} : memref<8x128xf32, #tpu.memory_space<vmem>>, vector<1x128xf32>,
    %22 = arith.index_cast %12 : i32 to index
    %c0_12 = arith.constant 0 : index
    %23 = vector.load %arg16[%22, %c0_12] : memref<40x128xf32, #tpu.memory_space<vmem>>, vector<1x128xf32>
    %c0_13 = arith.constant 0 : index
    %c0_14 = arith.constant 0 : index
    %24 = vector.load %arg20[%c0_13, %c0_14] : memref<8x128xf32, #tpu.memory_space<vmem>>, vector<1x128xf32>
    tpu.vector_store %arg20[%c0_13, %c0_14], %23 {strides = array<i32>} : memref<8x128xf32, #tpu.memory_space<vmem>>, vector<1x128xf32>,
    %25 = arith.index_cast %12 : i32 to index
    %c0_15 = arith.constant 0 : index
    %26 = vector.load %arg17[%25, %c0_15] : memref<40x128xf32, #tpu.memory_space<vmem>>, vector<1x128xf32>
    %c0_16 = arith.constant 0 : index
    %c0_17 = arith.constant 0 : index
    %27 = vector.load %arg22[%c0_16, %c0_17] : memref<8x128xf32, #tpu.memory_space<vmem>>, vector<1x128xf32>
    tpu.vector_store %arg22[%c0_16, %c0_17], %26 {strides = array<i32>} : memref<8x128xf32, #tpu.memory_space<vmem>>, vector<1x128xf32>,
    %c1_i32 = arith.constant 1 : i32
    %28 = arith.addi %3, %c1_i32 : i32
    %29 = arith.index_cast %28 : i32 to index
    %30 = memref.load %arg1[%29] : memref<32xi32, #tpu.memory_space<smem>>
    %c1_i32_18 = arith.constant 1 : i32
    %31 = arith.addi %3, %c1_i32_18 : i32
    %32 = arith.index_cast %31 : i32 to index
    %33 = memref.load %arg2[%32] : memref<32xi32, #tpu.memory_space<smem>>
    %c1_i32_19 = arith.constant 1 : i32
    %34 = arith.addi %3, %c1_i32_19 : i32
    %35 = arith.index_cast %34 : i32 to index
    %36 = memref.load %arg3[%35] : memref<32xi32, #tpu.memory_space<smem>>
    %37 = arith.index_cast %30 : i32 to index
    %c0_20 = arith.constant 0 : index
    %38 = vector.load %arg4[%37, %c0_20] : memref<16x128xf32, #tpu.memory_space<vmem>>, vector<1x128xf32>
    %c1 = arith.constant 1 : index
    %c0_21 = arith.constant 0 : index
    %39 = vector.load %arg18[%c1, %c0_21] : memref<8x128xf32, #tpu.memory_space<vmem>>, vector<1x128xf32>
    tpu.vector_store %arg18[%c1, %c0_21], %38 {strides = array<i32>} : memref<8x128xf32, #tpu.memory_space<vmem>>, vector<1x128xf32>,
    %40 = arith.index_cast %33 : i32 to index
    %c0_22 = arith.constant 0 : index
    %41 = vector.load %arg16[%40, %c0_22] : memref<40x128xf32, #tpu.memory_space<vmem>>, vector<1x128xf32>
    %c1_23 = arith.constant 1 : index
    %c0_24 = arith.constant 0 : index
    %42 = vector.load %arg19[%c1_23, %c0_24] : memref<8x128xf32, #tpu.memory_space<vmem>>, vector<1x128xf32>
    tpu.vector_store %arg19[%c1_23, %c0_24], %41 {strides = array<i32>} : memref<8x128xf32, #tpu.memory_space<vmem>>, vector<1x128xf32>,
    %43 = arith.index_cast %33 : i32 to index
    %c0_25 = arith.constant 0 : index
    %44 = vector.load %arg17[%43, %c0_25] : memref<40x128xf32, #tpu.memory_space<vmem>>, vector<1x128xf32>
    %c1_26 = arith.constant 1 : index
    %c0_27 = arith.constant 0 : index
    %45 = vector.load %arg21[%c1_26, %c0_27] : memref<8x128xf32, #tpu.memory_space<vmem>>, vector<1x128xf32>
    tpu.vector_store %arg21[%c1_26, %c0_27], %44 {strides = array<i32>} : memref<8x128xf32, #tpu.memory_space<vmem>>, vector<1x128xf32>,
    %46 = arith.index_cast %36 : i32 to index
    %c0_28 = arith.constant 0 : index
    %47 = vector.load %arg16[%46, %c0_28] : memref<40x128xf32, #tpu.memory_space<vmem>>, vector<1x128xf32>
    %c1_29 = arith.constant 1 : index
    %c0_30 = arith.constant 0 : index
    %48 = vector.load %arg20[%c1_29, %c0_30] : memref<8x128xf32, #tpu.memory_space<vmem>>, vector<1x128xf32>
    tpu.vector_store %arg20[%c1_29, %c0_30], %47 {strides = array<i32>} : memref<8x128xf32, #tpu.memory_space<vmem>>, vector<1x128xf32>,
    %49 = arith.index_cast %36 : i32 to index
    %c0_31 = arith.constant 0 : index
    %50 = vector.load %arg17[%49, %c0_31] : memref<40x128xf32, #tpu.memory_space<vmem>>, vector<1x128xf32>
    %c1_32 = arith.constant 1 : index
    %c0_33 = arith.constant 0 : index
    %51 = vector.load %arg22[%c1_32, %c0_33] : memref<8x128xf32, #tpu.memory_space<vmem>>, vector<1x128xf32>
    tpu.vector_store %arg22[%c1_32, %c0_33], %50 {strides = array<i32>} : memref<8x128xf32, #tpu.memory_space<vmem>>, vector<1x128xf32>,
    %c2_i32 = arith.constant 2 : i32
    %52 = arith.addi %3, %c2_i32 : i32
    %53 = arith.index_cast %52 : i32 to index
    %54 = memref.load %arg1[%53] : memref<32xi32, #tpu.memory_space<smem>>
    %c2_i32_34 = arith.constant 2 : i32
    %55 = arith.addi %3, %c2_i32_34 : i32
    %56 = arith.index_cast %55 : i32 to index
    %57 = memref.load %arg2[%56] : memref<32xi32, #tpu.memory_space<smem>>
    %c2_i32_35 = arith.constant 2 : i32
    %58 = arith.addi %3, %c2_i32_35 : i32
    %59 = arith.index_cast %58 : i32 to index
    %60 = memref.load %arg3[%59] : memref<32xi32, #tpu.memory_space<smem>>
    %61 = arith.index_cast %54 : i32 to index
    %c0_36 = arith.constant 0 : index
    %62 = vector.load %arg4[%61, %c0_36] : memref<16x128xf32, #tpu.memory_space<vmem>>, vector<1x128xf32>
    %c2 = arith.constant 2 : index
    %c0_37 = arith.constant 0 : index
    %63 = vector.load %arg18[%c2, %c0_37] : memref<8x128xf32, #tpu.memory_space<vmem>>, vector<1x128xf32>
    tpu.vector_store %arg18[%c2, %c0_37], %62 {strides = array<i32>} : memref<8x128xf32, #tpu.memory_space<vmem>>, vector<1x128xf32>,
    %64 = arith.index_cast %57 : i32 to index
    %c0_38 = arith.constant 0 : index
    %65 = vector.load %arg16[%64, %c0_38] : memref<40x128xf32, #tpu.memory_space<vmem>>, vector<1x128xf32>
    %c2_39 = arith.constant 2 : index
    %c0_40 = arith.constant 0 : index
    %66 = vector.load %arg19[%c2_39, %c0_40] : memref<8x128xf32, #tpu.memory_space<vmem>>, vector<1x128xf32>
    tpu.vector_store %arg19[%c2_39, %c0_40], %65 {strides = array<i32>} : memref<8x128xf32, #tpu.memory_space<vmem>>, vector<1x128xf32>,
    %67 = arith.index_cast %57 : i32 to index
    %c0_41 = arith.constant 0 : index
    %68 = vector.load %arg17[%67, %c0_41] : memref<40x128xf32, #tpu.memory_space<vmem>>, vector<1x128xf32>
    %c2_42 = arith.constant 2 : index
    %c0_43 = arith.constant 0 : index
    %69 = vector.load %arg21[%c2_42, %c0_43] : memref<8x128xf32, #tpu.memory_space<vmem>>, vector<1x128xf32>
    tpu.vector_store %arg21[%c2_42, %c0_43], %68 {strides = array<i32>} : memref<8x128xf32, #tpu.memory_space<vmem>>, vector<1x128xf32>,
    %70 = arith.index_cast %60 : i32 to index
    %c0_44 = arith.constant 0 : index
    %71 = vector.load %arg16[%70, %c0_44] : memref<40x128xf32, #tpu.memory_space<vmem>>, vector<1x128xf32>
    %c2_45 = arith.constant 2 : index
    %c0_46 = arith.constant 0 : index
    %72 = vector.load %arg20[%c2_45, %c0_46] : memref<8x128xf32, #tpu.memory_space<vmem>>, vector<1x128xf32>
    tpu.vector_store %arg20[%c2_45, %c0_46], %71 {strides = array<i32>} : memref<8x128xf32, #tpu.memory_space<vmem>>, vector<1x128xf32>,
    %73 = arith.index_cast %60 : i32 to index
    %c0_47 = arith.constant 0 : index
    %74 = vector.load %arg17[%73, %c0_47] : memref<40x128xf32, #tpu.memory_space<vmem>>, vector<1x128xf32>
    %c2_48 = arith.constant 2 : index
    %c0_49 = arith.constant 0 : index
    %75 = vector.load %arg22[%c2_48, %c0_49] : memref<8x128xf32, #tpu.memory_space<vmem>>, vector<1x128xf32>
    tpu.vector_store %arg22[%c2_48, %c0_49], %74 {strides = array<i32>} : memref<8x128xf32, #tpu.memory_space<vmem>>, vector<1x128xf32>,
    %c3_i32 = arith.constant 3 : i32
    %76 = arith.addi %3, %c3_i32 : i32
    %77 = arith.index_cast %76 : i32 to index
    %78 = memref.load %arg1[%77] : memref<32xi32, #tpu.memory_space<smem>>
    %c3_i32_50 = arith.constant 3 : i32
    %79 = arith.addi %3, %c3_i32_50 : i32
    %80 = arith.index_cast %79 : i32 to index
    %81 = memref.load %arg2[%80] : memref<32xi32, #tpu.memory_space<smem>>
    %c3_i32_51 = arith.constant 3 : i32
    %82 = arith.addi %3, %c3_i32_51 : i32
    %83 = arith.index_cast %82 : i32 to index
    %84 = memref.load %arg3[%83] : memref<32xi32, #tpu.memory_space<smem>>
    %85 = arith.index_cast %78 : i32 to index
    %c0_52 = arith.constant 0 : index
    %86 = vector.load %arg4[%85, %c0_52] : memref<16x128xf32, #tpu.memory_space<vmem>>, vector<1x128xf32>
    %c3 = arith.constant 3 : index
    %c0_53 = arith.constant 0 : index
    %87 = vector.load %arg18[%c3, %c0_53] : memref<8x128xf32, #tpu.memory_space<vmem>>, vector<1x128xf32>
    tpu.vector_store %arg18[%c3, %c0_53], %86 {strides = array<i32>} : memref<8x128xf32, #tpu.memory_space<vmem>>, vector<1x128xf32>,
    %88 = arith.index_cast %81 : i32 to index
    %c0_54 = arith.constant 0 : index
    %89 = vector.load %arg16[%88, %c0_54] : memref<40x128xf32, #tpu.memory_space<vmem>>, vector<1x128xf32>
    %c3_55 = arith.constant 3 : index
    %c0_56 = arith.constant 0 : index
    %90 = vector.load %arg19[%c3_55, %c0_56] : memref<8x128xf32, #tpu.memory_space<vmem>>, vector<1x128xf32>
    tpu.vector_store %arg19[%c3_55, %c0_56], %89 {strides = array<i32>} : memref<8x128xf32, #tpu.memory_space<vmem>>, vector<1x128xf32>,
    %91 = arith.index_cast %81 : i32 to index
    %c0_57 = arith.constant 0 : index
    %92 = vector.load %arg17[%91, %c0_57] : memref<40x128xf32, #tpu.memory_space<vmem>>, vector<1x128xf32>
    %c3_58 = arith.constant 3 : index
    %c0_59 = arith.constant 0 : index
    %93 = vector.load %arg21[%c3_58, %c0_59] : memref<8x128xf32, #tpu.memory_space<vmem>>, vector<1x128xf32>
    tpu.vector_store %arg21[%c3_58, %c0_59], %92 {strides = array<i32>} : memref<8x128xf32, #tpu.memory_space<vmem>>, vector<1x128xf32>,
    %94 = arith.index_cast %84 : i32 to index
    %c0_60 = arith.constant 0 : index
    %95 = vector.load %arg16[%94, %c0_60] : memref<40x128xf32, #tpu.memory_space<vmem>>, vector<1x128xf32>
    %c3_61 = arith.constant 3 : index
    %c0_62 = arith.constant 0 : index
    %96 = vector.load %arg20[%c3_61, %c0_62] : memref<8x128xf32, #tpu.memory_space<vmem>>, vector<1x128xf32>
    tpu.vector_store %arg20[%c3_61, %c0_62], %95 {strides = array<i32>} : memref<8x128xf32, #tpu.memory_space<vmem>>, vector<1x128xf32>,
    %97 = arith.index_cast %84 : i32 to index
    %c0_63 = arith.constant 0 : index
    %98 = vector.load %arg17[%97, %c0_63] : memref<40x128xf32, #tpu.memory_space<vmem>>, vector<1x128xf32>
    %c3_64 = arith.constant 3 : index
    %c0_65 = arith.constant 0 : index
    %99 = vector.load %arg22[%c3_64, %c0_65] : memref<8x128xf32, #tpu.memory_space<vmem>>, vector<1x128xf32>
    tpu.vector_store %arg22[%c3_64, %c0_65], %98 {strides = array<i32>} : memref<8x128xf32, #tpu.memory_space<vmem>>, vector<1x128xf32>,
    %c4_i32 = arith.constant 4 : i32
    %100 = arith.addi %3, %c4_i32 : i32
    %101 = arith.index_cast %100 : i32 to index
    %102 = memref.load %arg1[%101] : memref<32xi32, #tpu.memory_space<smem>>
    %c4_i32_66 = arith.constant 4 : i32
    %103 = arith.addi %3, %c4_i32_66 : i32
    %104 = arith.index_cast %103 : i32 to index
    %105 = memref.load %arg2[%104] : memref<32xi32, #tpu.memory_space<smem>>
    %c4_i32_67 = arith.constant 4 : i32
    %106 = arith.addi %3, %c4_i32_67 : i32
    %107 = arith.index_cast %106 : i32 to index
    %108 = memref.load %arg3[%107] : memref<32xi32, #tpu.memory_space<smem>>
    %109 = arith.index_cast %102 : i32 to index
    %c0_68 = arith.constant 0 : index
    %110 = vector.load %arg4[%109, %c0_68] : memref<16x128xf32, #tpu.memory_space<vmem>>, vector<1x128xf32>
    %c4 = arith.constant 4 : index
    %c0_69 = arith.constant 0 : index
    %111 = vector.load %arg18[%c4, %c0_69] : memref<8x128xf32, #tpu.memory_space<vmem>>, vector<1x128xf32>
    tpu.vector_store %arg18[%c4, %c0_69], %110 {strides = array<i32>} : memref<8x128xf32, #tpu.memory_space<vmem>>, vector<1x128xf32>,
    %112 = arith.index_cast %105 : i32 to index
    %c0_70 = arith.constant 0 : index
    %113 = vector.load %arg16[%112, %c0_70] : memref<40x128xf32, #tpu.memory_space<vmem>>, vector<1x128xf32>
    %c4_71 = arith.constant 4 : index
    %c0_72 = arith.constant 0 : index
    %114 = vector.load %arg19[%c4_71, %c0_72] : memref<8x128xf32, #tpu.memory_space<vmem>>, vector<1x128xf32>
    tpu.vector_store %arg19[%c4_71, %c0_72], %113 {strides = array<i32>} : memref<8x128xf32, #tpu.memory_space<vmem>>, vector<1x128xf32>,
    %115 = arith.index_cast %105 : i32 to index
    %c0_73 = arith.constant 0 : index
    %116 = vector.load %arg17[%115, %c0_73] : memref<40x128xf32, #tpu.memory_space<vmem>>, vector<1x128xf32>
    %c4_74 = arith.constant 4 : index
    %c0_75 = arith.constant 0 : index
    %117 = vector.load %arg21[%c4_74, %c0_75] : memref<8x128xf32, #tpu.memory_space<vmem>>, vector<1x128xf32>
    tpu.vector_store %arg21[%c4_74, %c0_75], %116 {strides = array<i32>} : memref<8x128xf32, #tpu.memory_space<vmem>>, vector<1x128xf32>,
    %118 = arith.index_cast %108 : i32 to index
    %c0_76 = arith.constant 0 : index
    %119 = vector.load %arg16[%118, %c0_76] : memref<40x128xf32, #tpu.memory_space<vmem>>, vector<1x128xf32>
    %c4_77 = arith.constant 4 : index
    %c0_78 = arith.constant 0 : index
    %120 = vector.load %arg20[%c4_77, %c0_78] : memref<8x128xf32, #tpu.memory_space<vmem>>, vector<1x128xf32>
    tpu.vector_store %arg20[%c4_77, %c0_78], %119 {strides = array<i32>} : memref<8x128xf32, #tpu.memory_space<vmem>>, vector<1x128xf32>,
    %121 = arith.index_cast %108 : i32 to index
    %c0_79 = arith.constant 0 : index
    %122 = vector.load %arg17[%121, %c0_79] : memref<40x128xf32, #tpu.memory_space<vmem>>, vector<1x128xf32>
    %c4_80 = arith.constant 4 : index
    %c0_81 = arith.constant 0 : index
    %123 = vector.load %arg22[%c4_80, %c0_81] : memref<8x128xf32, #tpu.memory_space<vmem>>, vector<1x128xf32>
    tpu.vector_store %arg22[%c4_80, %c0_81], %122 {strides = array<i32>} : memref<8x128xf32, #tpu.memory_space<vmem>>, vector<1x128xf32>,
    %c5_i32 = arith.constant 5 : i32
    %124 = arith.addi %3, %c5_i32 : i32
    %125 = arith.index_cast %124 : i32 to index
    %126 = memref.load %arg1[%125] : memref<32xi32, #tpu.memory_space<smem>>
    %c5_i32_82 = arith.constant 5 : i32
    %127 = arith.addi %3, %c5_i32_82 : i32
    %128 = arith.index_cast %127 : i32 to index
    %129 = memref.load %arg2[%128] : memref<32xi32, #tpu.memory_space<smem>>
    %c5_i32_83 = arith.constant 5 : i32
    %130 = arith.addi %3, %c5_i32_83 : i32
    %131 = arith.index_cast %130 : i32 to index
    %132 = memref.load %arg3[%131] : memref<32xi32, #tpu.memory_space<smem>>
    %133 = arith.index_cast %126 : i32 to index
    %c0_84 = arith.constant 0 : index
    %134 = vector.load %arg4[%133, %c0_84] : memref<16x128xf32, #tpu.memory_space<vmem>>, vector<1x128xf32>
    %c5 = arith.constant 5 : index
    %c0_85 = arith.constant 0 : index
    %135 = vector.load %arg18[%c5, %c0_85] : memref<8x128xf32, #tpu.memory_space<vmem>>, vector<1x128xf32>
    tpu.vector_store %arg18[%c5, %c0_85], %134 {strides = array<i32>} : memref<8x128xf32, #tpu.memory_space<vmem>>, vector<1x128xf32>,
    %136 = arith.index_cast %129 : i32 to index
    %c0_86 = arith.constant 0 : index
    %137 = vector.load %arg16[%136, %c0_86] : memref<40x128xf32, #tpu.memory_space<vmem>>, vector<1x128xf32>
    %c5_87 = arith.constant 5 : index
    %c0_88 = arith.constant 0 : index
    %138 = vector.load %arg19[%c5_87, %c0_88] : memref<8x128xf32, #tpu.memory_space<vmem>>, vector<1x128xf32>
    tpu.vector_store %arg19[%c5_87, %c0_88], %137 {strides = array<i32>} : memref<8x128xf32, #tpu.memory_space<vmem>>, vector<1x128xf32>,
    %139 = arith.index_cast %129 : i32 to index
    %c0_89 = arith.constant 0 : index
    %140 = vector.load %arg17[%139, %c0_89] : memref<40x128xf32, #tpu.memory_space<vmem>>, vector<1x128xf32>
    %c5_90 = arith.constant 5 : index
    %c0_91 = arith.constant 0 : index
    %141 = vector.load %arg21[%c5_90, %c0_91] : memref<8x128xf32, #tpu.memory_space<vmem>>, vector<1x128xf32>
    tpu.vector_store %arg21[%c5_90, %c0_91], %140 {strides = array<i32>} : memref<8x128xf32, #tpu.memory_space<vmem>>, vector<1x128xf32>,
    %142 = arith.index_cast %132 : i32 to index
    %c0_92 = arith.constant 0 : index
    %143 = vector.load %arg16[%142, %c0_92] : memref<40x128xf32, #tpu.memory_space<vmem>>, vector<1x128xf32>
    %c5_93 = arith.constant 5 : index
    %c0_94 = arith.constant 0 : index
    %144 = vector.load %arg20[%c5_93, %c0_94] : memref<8x128xf32, #tpu.memory_space<vmem>>, vector<1x128xf32>
    tpu.vector_store %arg20[%c5_93, %c0_94], %143 {strides = array<i32>} : memref<8x128xf32, #tpu.memory_space<vmem>>, vector<1x128xf32>,
    %145 = arith.index_cast %132 : i32 to index
    %c0_95 = arith.constant 0 : index
    %146 = vector.load %arg17[%145, %c0_95] : memref<40x128xf32, #tpu.memory_space<vmem>>, vector<1x128xf32>
    %c5_96 = arith.constant 5 : index
    %c0_97 = arith.constant 0 : index
    %147 = vector.load %arg22[%c5_96, %c0_97] : memref<8x128xf32, #tpu.memory_space<vmem>>, vector<1x128xf32>
    tpu.vector_store %arg22[%c5_96, %c0_97], %146 {strides = array<i32>} : memref<8x128xf32, #tpu.memory_space<vmem>>, vector<1x128xf32>,
    %c6_i32 = arith.constant 6 : i32
    %148 = arith.addi %3, %c6_i32 : i32
    %149 = arith.index_cast %148 : i32 to index
    %150 = memref.load %arg1[%149] : memref<32xi32, #tpu.memory_space<smem>>
    %c6_i32_98 = arith.constant 6 : i32
    %151 = arith.addi %3, %c6_i32_98 : i32
    %152 = arith.index_cast %151 : i32 to index
    %153 = memref.load %arg2[%152] : memref<32xi32, #tpu.memory_space<smem>>
    %c6_i32_99 = arith.constant 6 : i32
    %154 = arith.addi %3, %c6_i32_99 : i32
    %155 = arith.index_cast %154 : i32 to index
    %156 = memref.load %arg3[%155] : memref<32xi32, #tpu.memory_space<smem>>
    %157 = arith.index_cast %150 : i32 to index
    %c0_100 = arith.constant 0 : index
    %158 = vector.load %arg4[%157, %c0_100] : memref<16x128xf32, #tpu.memory_space<vmem>>, vector<1x128xf32>
    %c6 = arith.constant 6 : index
    %c0_101 = arith.constant 0 : index
    %159 = vector.load %arg18[%c6, %c0_101] : memref<8x128xf32, #tpu.memory_space<vmem>>, vector<1x128xf32>
    tpu.vector_store %arg18[%c6, %c0_101], %158 {strides = array<i32>} : memref<8x128xf32, #tpu.memory_space<vmem>>, vector<1x128xf32>,
    %160 = arith.index_cast %153 : i32 to index
    %c0_102 = arith.constant 0 : index
    %161 = vector.load %arg16[%160, %c0_102] : memref<40x128xf32, #tpu.memory_space<vmem>>, vector<1x128xf32>
    %c6_103 = arith.constant 6 : index
    %c0_104 = arith.constant 0 : index
    %162 = vector.load %arg19[%c6_103, %c0_104] : memref<8x128xf32, #tpu.memory_space<vmem>>, vector<1x128xf32>
    tpu.vector_store %arg19[%c6_103, %c0_104], %161 {strides = array<i32>} : memref<8x128xf32, #tpu.memory_space<vmem>>, vector<1x128xf32>,
    %163 = arith.index_cast %153 : i32 to index
    %c0_105 = arith.constant 0 : index
    %164 = vector.load %arg17[%163, %c0_105] : memref<40x128xf32, #tpu.memory_space<vmem>>, vector<1x128xf32>
    %c6_106 = arith.constant 6 : index
    %c0_107 = arith.constant 0 : index
    %165 = vector.load %arg21[%c6_106, %c0_107] : memref<8x128xf32, #tpu.memory_space<vmem>>, vector<1x128xf32>
    tpu.vector_store %arg21[%c6_106, %c0_107], %164 {strides = array<i32>} : memref<8x128xf32, #tpu.memory_space<vmem>>, vector<1x128xf32>,
    %166 = arith.index_cast %156 : i32 to index
    %c0_108 = arith.constant 0 : index
    %167 = vector.load %arg16[%166, %c0_108] : memref<40x128xf32, #tpu.memory_space<vmem>>, vector<1x128xf32>
    %c6_109 = arith.constant 6 : index
    %c0_110 = arith.constant 0 : index
    %168 = vector.load %arg20[%c6_109, %c0_110] : memref<8x128xf32, #tpu.memory_space<vmem>>, vector<1x128xf32>
    tpu.vector_store %arg20[%c6_109, %c0_110], %167 {strides = array<i32>} : memref<8x128xf32, #tpu.memory_space<vmem>>, vector<1x128xf32>,
    %169 = arith.index_cast %156 : i32 to index
    %c0_111 = arith.constant 0 : index
    %170 = vector.load %arg17[%169, %c0_111] : memref<40x128xf32, #tpu.memory_space<vmem>>, vector<1x128xf32>
    %c6_112 = arith.constant 6 : index
    %c0_113 = arith.constant 0 : index
    %171 = vector.load %arg22[%c6_112, %c0_113] : memref<8x128xf32, #tpu.memory_space<vmem>>, vector<1x128xf32>
    tpu.vector_store %arg22[%c6_112, %c0_113], %170 {strides = array<i32>} : memref<8x128xf32, #tpu.memory_space<vmem>>, vector<1x128xf32>,
    %c7_i32 = arith.constant 7 : i32
    %172 = arith.addi %3, %c7_i32 : i32
    %173 = arith.index_cast %172 : i32 to index
    %174 = memref.load %arg1[%173] : memref<32xi32, #tpu.memory_space<smem>>
    %c7_i32_114 = arith.constant 7 : i32
    %175 = arith.addi %3, %c7_i32_114 : i32
    %176 = arith.index_cast %175 : i32 to index
    %177 = memref.load %arg2[%176] : memref<32xi32, #tpu.memory_space<smem>>
    %c7_i32_115 = arith.constant 7 : i32
    %178 = arith.addi %3, %c7_i32_115 : i32
    %179 = arith.index_cast %178 : i32 to index
    %180 = memref.load %arg3[%179] : memref<32xi32, #tpu.memory_space<smem>>
    %181 = arith.index_cast %174 : i32 to index
    %c0_116 = arith.constant 0 : index
    %182 = vector.load %arg4[%181, %c0_116] : memref<16x128xf32, #tpu.memory_space<vmem>>, vector<1x128xf32>
    %c7 = arith.constant 7 : index
    %c0_117 = arith.constant 0 : index
    %183 = vector.load %arg18[%c7, %c0_117] : memref<8x128xf32, #tpu.memory_space<vmem>>, vector<1x128xf32>
    tpu.vector_store %arg18[%c7, %c0_117], %182 {strides = array<i32>} : memref<8x128xf32, #tpu.memory_space<vmem>>, vector<1x128xf32>,
    %184 = arith.index_cast %177 : i32 to index
    %c0_118 = arith.constant 0 : index
    %185 = vector.load %arg16[%184, %c0_118] : memref<40x128xf32, #tpu.memory_space<vmem>>, vector<1x128xf32>
    %c7_119 = arith.constant 7 : index
    %c0_120 = arith.constant 0 : index
    %186 = vector.load %arg19[%c7_119, %c0_120] : memref<8x128xf32, #tpu.memory_space<vmem>>, vector<1x128xf32>
    tpu.vector_store %arg19[%c7_119, %c0_120], %185 {strides = array<i32>} : memref<8x128xf32, #tpu.memory_space<vmem>>, vector<1x128xf32>,
    %187 = arith.index_cast %177 : i32 to index
    %c0_121 = arith.constant 0 : index
    %188 = vector.load %arg17[%187, %c0_121] : memref<40x128xf32, #tpu.memory_space<vmem>>, vector<1x128xf32>
    %c7_122 = arith.constant 7 : index
    %c0_123 = arith.constant 0 : index
    %189 = vector.load %arg21[%c7_122, %c0_123] : memref<8x128xf32, #tpu.memory_space<vmem>>, vector<1x128xf32>
    tpu.vector_store %arg21[%c7_122, %c0_123], %188 {strides = array<i32>} : memref<8x128xf32, #tpu.memory_space<vmem>>, vector<1x128xf32>,
    %190 = arith.index_cast %180 : i32 to index
    %c0_124 = arith.constant 0 : index
    %191 = vector.load %arg16[%190, %c0_124] : memref<40x128xf32, #tpu.memory_space<vmem>>, vector<1x128xf32>
    %c7_125 = arith.constant 7 : index
    %c0_126 = arith.constant 0 : index
    %192 = vector.load %arg20[%c7_125, %c0_126] : memref<8x128xf32, #tpu.memory_space<vmem>>, vector<1x128xf32>
    tpu.vector_store %arg20[%c7_125, %c0_126], %191 {strides = array<i32>} : memref<8x128xf32, #tpu.memory_space<vmem>>, vector<1x128xf32>,
    %193 = arith.index_cast %180 : i32 to index
    %c0_127 = arith.constant 0 : index
    %194 = vector.load %arg17[%193, %c0_127] : memref<40x128xf32, #tpu.memory_space<vmem>>, vector<1x128xf32>
    %c7_128 = arith.constant 7 : index
    %c0_129 = arith.constant 0 : index
    %195 = vector.load %arg22[%c7_128, %c0_129] : memref<8x128xf32, #tpu.memory_space<vmem>>, vector<1x128xf32>
    tpu.vector_store %arg22[%c7_128, %c0_129], %194 {strides = array<i32>} : memref<8x128xf32, #tpu.memory_space<vmem>>, vector<1x128xf32>,
    %c0_130 = arith.constant 0 : index
    %c0_131 = arith.constant 0 : index
    %196 = vector.load %arg18[%c0_130, %c0_131] : memref<8x128xf32, #tpu.memory_space<vmem>>, vector<8x128xf32>
    %c0_132 = arith.constant 0 : index
    %c0_133 = arith.constant 0 : index
    %197 = vector.load %arg19[%c0_132, %c0_133] : memref<8x128xf32, #tpu.memory_space<vmem>>, vector<8x128xf32>
    %c0_134 = arith.constant 0 : index
    %c0_135 = arith.constant 0 : index
    %198 = vector.load %arg20[%c0_134, %c0_135] : memref<8x128xf32, #tpu.memory_space<vmem>>, vector<8x128xf32>
    %c0_136 = arith.constant 0 : index
    %c0_137 = arith.constant 0 : index
    %199 = vector.load %arg5[%c0_136, %c0_137] : memref<128x640xf32, #tpu.memory_space<vmem>>, vector<128x640xf32>
    %cst = arith.constant dense<0.000000e+00> : vector<8x640xf32>
    %200 = tpu.matmul %196, %199, %cst {dimension_numbers = #tpu.dot_dimension_numbers<[1], [0], [0], [1], [0, 0, 1, 1], [], []>} : vector<8x128xf32>, vector<128x640xf32>, vector<8x640xf32> -> vector<8x640xf32>
    %c0_138 = arith.constant 0 : index
    %c0_139 = arith.constant 0 : index
    %201 = vector.load %arg6[%c0_138, %c0_139] : memref<128x640xf32, #tpu.memory_space<vmem>>, vector<128x640xf32>
    %cst_140 = arith.constant dense<0.000000e+00> : vector<8x640xf32>
    %202 = tpu.matmul %197, %201, %cst_140 {dimension_numbers = #tpu.dot_dimension_numbers<[1], [0], [0], [1], [0, 0, 1, 1], [], []>} : vector<8x128xf32>, vector<128x640xf32>, vector<8x640xf32> -> vector<8x640xf32>
    %203 = arith.addf %200, %202 : vector<8x640xf32>
    %c0_141 = arith.constant 0 : index
    %c0_142 = arith.constant 0 : index
    %204 = vector.load %arg7[%c0_141, %c0_142] : memref<128x640xf32, #tpu.memory_space<vmem>>, vector<128x640xf32>
    %cst_143 = arith.constant dense<0.000000e+00> : vector<8x640xf32>
    %205 = tpu.matmul %198, %204, %cst_143 {dimension_numbers = #tpu.dot_dimension_numbers<[1], [0], [0], [1], [0, 0, 1, 1], [], []>} : vector<8x128xf32>, vector<128x640xf32>, vector<8x640xf32> -> vector<8x640xf32>
    %206 = arith.addf %203, %205 : vector<8x640xf32>
    %c0_144 = arith.constant 0 : index
    %c0_145 = arith.constant 0 : index
    %207 = vector.load %arg8[%c0_144, %c0_145] : memref<1x640xf32, #tpu.memory_space<vmem>>, vector<1x640xf32>
    %208 = vector.broadcast %207 : vector<1x640xf32> to vector<8x640xf32>
    %209 = arith.addf %206, %208 : vector<8x640xf32>
    %210 = arith.negf %209 : vector<8x640xf32>
    %211 = math.exp %210 : vector<8x640xf32>
    %cst_146 = arith.constant 1.000000e+00 : f32
    %212 = vector.broadcast %cst_146 : f32 to vector<8x640xf32>
    %213 = arith.addf %212, %211 : vector<8x640xf32>
    %214 = arith.divf %212, %213 : vector<8x640xf32>
    %215 = vector.extract_strided_slice %214 {offsets = [0, 0], sizes = [8, 128], strides = [1, 1]} : vector<8x640xf32> to vector<8x128xf32>
    %216 = vector.extract_strided_slice %214 {offsets = [0, 128], sizes = [8, 128], strides = [1, 1]} : vector<8x640xf32> to vector<8x128xf32>
    %217 = vector.extract_strided_slice %214 {offsets = [0, 256], sizes = [8, 128], strides = [1, 1]} : vector<8x640xf32> to vector<8x128xf32>
    %218 = math.tanh %217 : vector<8x128xf32>
    %219 = vector.extract_strided_slice %214 {offsets = [0, 384], sizes = [8, 128], strides = [1, 1]} : vector<8x640xf32> to vector<8x128xf32>
    %220 = vector.extract_strided_slice %214 {offsets = [0, 512], sizes = [8, 128], strides = [1, 1]} : vector<8x640xf32> to vector<8x128xf32>
    %221 = arith.mulf %215, %218 : vector<8x128xf32>
    %c0_147 = arith.constant 0 : index
    %c0_148 = arith.constant 0 : index
    %222 = vector.load %arg21[%c0_147, %c0_148] : memref<8x128xf32, #tpu.memory_space<vmem>>, vector<8x128xf32>
    %223 = arith.mulf %219, %222 : vector<8x128xf32>
    %224 = arith.addf %221, %223 : vector<8x128xf32>
    %c0_149 = arith.constant 0 : index
    %c0_150 = arith.constant 0 : index
    %225 = vector.load %arg22[%c0_149, %c0_150] : memref<8x128xf32, #tpu.memory_space<vmem>>, vector<8x128xf32>
    %226 = arith.mulf %220, %225 : vector<8x128xf32>
    %227 = arith.addf %224, %226 : vector<8x128xf32>
    %228 = math.tanh %227 : vector<8x128xf32>
    %229 = arith.mulf %216, %228 : vector<8x128xf32>
    %c1_i32_151 = arith.constant 1 : i32
    %230 = arith.addi %arg0, %c1_i32_151 : i32
    %c8_i32_152 = arith.constant 8 : i32
    %231 = arith.muli %230, %c8_i32_152 : i32
    %232 = tpu.assume_multiple %231, 8 : i32
    %233 = arith.index_cast %232 : i32 to index
    %c0_153 = arith.constant 0 : index
    %234 = vector.load %arg16[%233, %c0_153] : memref<40x128xf32, #tpu.memory_space<vmem>>, vector<8x128xf32>
    tpu.vector_store %arg16[%233, %c0_153], %229 {strides = array<i32>} : memref<40x128xf32, #tpu.memory_space<vmem>>, vector<8x128xf32>,
    %235 = arith.index_cast %232 : i32 to index
    %c0_154 = arith.constant 0 : index
    %236 = vector.load %arg17[%235, %c0_154] : memref<40x128xf32, #tpu.memory_space<vmem>>, vector<8x128xf32>
    tpu.vector_store %arg17[%235, %c0_154], %227 {strides = array<i32>} : memref<40x128xf32, #tpu.memory_space<vmem>>, vector<8x128xf32>,
    %c3_i32_155 = arith.constant 3 : i32
    %237 = arith.cmpi eq, %arg0, %c3_i32_155 : i32
    %238 = arith.extui %237 : i1 to i32
    %c0_i32_156 = arith.constant 0 : i32
    %239 = arith.cmpi ne, %238, %c0_i32_156 : i32
    scf.if %239 {
      %240 = vector.extract_strided_slice %229 {offsets = [0, 0], sizes = [1, 128], strides = [1, 1]} : vector<8x128xf32> to vector<1x128xf32>
      %c0_157 = arith.constant 0 : index
      %c0_158 = arith.constant 0 : index
      %241 = vector.load %arg9[%c0_157, %c0_158] : memref<128x64xf32, #tpu.memory_space<vmem>>, vector<128x64xf32>
      %cst_159 = arith.constant dense<0.000000e+00> : vector<1x64xf32>
      %242 = tpu.matmul %240, %241, %cst_159 {dimension_numbers = #tpu.dot_dimension_numbers<[1], [0], [0], [1], [0, 0, 1, 1], [], []>} : vector<1x128xf32>, vector<128x64xf32>, vector<1x64xf32> -> vector<1x64xf32>
      %c0_160 = arith.constant 0 : index
      %c0_161 = arith.constant 0 : index
      %243 = vector.load %arg10[%c0_160, %c0_161] : memref<1x64xf32, #tpu.memory_space<vmem>>, vector<1x64xf32>
      %244 = arith.addf %242, %243 : vector<1x64xf32>
      %cst_162 = arith.constant 0.000000e+00 : f32
      %245 = vector.broadcast %cst_162 : f32 to vector<1x64xf32>
      %246 = arith.maximumf %244, %245 : vector<1x64xf32>
      %c0_163 = arith.constant 0 : index
      %c0_164 = arith.constant 0 : index
      %247 = vector.load %arg11[%c0_163, %c0_164] : memref<1x64xf32, #tpu.memory_space<vmem>>, vector<1x64xf32>
      %248 = arith.mulf %246, %247 : vector<1x64xf32>
      %cst_165 = arith.constant dense<0.000000e+00> : vector<1xf32>
      %249 = vector.multi_reduction <add>, %248, %cst_165 [1] : vector<1x64xf32> to vector<1xf32>
      %250 = vector.shape_cast %249 : vector<1xf32> to vector<1x1xf32>
      %c0_166 = arith.constant 0 : index
      %c0_167 = arith.constant 0 : index
      %251 = vector.load %arg12[%c0_166, %c0_167] : memref<1x1xf32, #tpu.memory_space<vmem>>, vector<1x1xf32>
      %252 = arith.addf %250, %251 : vector<1x1xf32>
      %c0_168 = arith.constant 0 : index
      %c0_169 = arith.constant 0 : index
      %253 = vector.load %arg13[%c0_168, %c0_169] : memref<1x1xf32, #tpu.memory_space<vmem>>, vector<1x1xf32>
      tpu.vector_store %arg13[%c0_168, %c0_169], %252 {strides = array<i32>} : memref<1x1xf32, #tpu.memory_space<vmem>>, vector<1x1xf32>,
      %c0_170 = arith.constant 0 : index
      %c0_171 = arith.constant 0 : index
      %254 = vector.load %arg14[%c0_170, %c0_171] : memref<1x128xf32, #tpu.memory_space<vmem>>, vector<1x128xf32>
      tpu.vector_store %arg14[%c0_170, %c0_171], %240 {strides = array<i32>} : memref<1x128xf32, #tpu.memory_space<vmem>>, vector<1x128xf32>,
      %255 = vector.extract_strided_slice %227 {offsets = [0, 0], sizes = [1, 128], strides = [1, 1]} : vector<8x128xf32> to vector<1x128xf32>
      %c0_172 = arith.constant 0 : index
      %c0_173 = arith.constant 0 : index
      %256 = vector.load %arg15[%c0_172, %c0_173] : memref<1x128xf32, #tpu.memory_space<vmem>>, vector<1x128xf32>
      tpu.vector_store %arg15[%c0_172, %c0_173], %255 {strides = array<i32>} : memref<1x128xf32, #tpu.memory_space<vmem>>, vector<1x128xf32>,
    } else {
    }
    return
  }
  func.func @transform_0(%arg0: i32, %arg1: memref<32xi32, #tpu.memory_space<smem>>, %arg2: memref<32xi32, #tpu.memory_space<smem>>, %arg3: memref<32xi32, #tpu.memory_space<smem>>) -> (i32, i32) {
    %c0_i32 = arith.constant 0 : i32
    %c0_i32_0 = arith.constant 0 : i32
    %c0_i32_1 = arith.constant 0 : i32
    return %c0_i32, %c0_i32_0 : i32, i32
  }
  func.func @transform_1(%arg0: i32, %arg1: memref<32xi32, #tpu.memory_space<smem>>, %arg2: memref<32xi32, #tpu.memory_space<smem>>, %arg3: memref<32xi32, #tpu.memory_space<smem>>) -> (i32, i32) {
    %c0_i32 = arith.constant 0 : i32
    %c0_i32_0 = arith.constant 0 : i32
    %c0_i32_1 = arith.constant 0 : i32
    return %c0_i32, %c0_i32_0 : i32, i32
  }
  func.func @transform_2(%arg0: i32, %arg1: memref<32xi32, #tpu.memory_space<smem>>, %arg2: memref<32xi32, #tpu.memory_space<smem>>, %arg3: memref<32xi32, #tpu.memory_space<smem>>) -> (i32, i32) {
    %c0_i32 = arith.constant 0 : i32
    %c0_i32_0 = arith.constant 0 : i32
    %c0_i32_1 = arith.constant 0 : i32
    return %c0_i32, %c0_i32_0 : i32, i32
  }
  func.func @transform_3(%arg0: i32, %arg1: memref<32xi32, #tpu.memory_space<smem>>, %arg2: memref<32xi32, #tpu.memory_space<smem>>, %arg3: memref<32xi32, #tpu.memory_space<smem>>) -> (i32, i32) {
    %c0_i32 = arith.constant 0 : i32
    %c0_i32_0 = arith.constant 0 : i32
    %c0_i32_1 = arith.constant 0 : i32
    return %c0_i32, %c0_i32_0 : i32, i32
  }
  func.func @transform_4(%arg0: i32, %arg1: memref<32xi32, #tpu.memory_space<smem>>, %arg2: memref<32xi32, #tpu.memory_space<smem>>, %arg3: memref<32xi32, #tpu.memory_space<smem>>) -> (i32, i32) {
    %c0_i32 = arith.constant 0 : i32
    %c0_i32_0 = arith.constant 0 : i32
    %c0_i32_1 = arith.constant 0 : i32
    return %c0_i32, %c0_i32_0 : i32, i32
  }
  func.func @transform_5(%arg0: i32, %arg1: memref<32xi32, #tpu.memory_space<smem>>, %arg2: memref<32xi32, #tpu.memory_space<smem>>, %arg3: memref<32xi32, #tpu.memory_space<smem>>) -> (i32, i32) {
    %c0_i32 = arith.constant 0 : i32
    %c0_i32_0 = arith.constant 0 : i32
    %c0_i32_1 = arith.constant 0 : i32
    return %c0_i32, %c0_i32_0 : i32, i32
  }
  func.func @transform_6(%arg0: i32, %arg1: memref<32xi32, #tpu.memory_space<smem>>, %arg2: memref<32xi32, #tpu.memory_space<smem>>, %arg3: memref<32xi32, #tpu.memory_space<smem>>) -> (i32, i32) {
    %c0_i32 = arith.constant 0 : i32
    %c0_i32_0 = arith.constant 0 : i32
    %c0_i32_1 = arith.constant 0 : i32
    return %c0_i32, %c0_i32_0 : i32, i32
  }
  func.func @transform_7(%arg0: i32, %arg1: memref<32xi32, #tpu.memory_space<smem>>, %arg2: memref<32xi32, #tpu.memory_space<smem>>, %arg3: memref<32xi32, #tpu.memory_space<smem>>) -> (i32, i32) {
    %c0_i32 = arith.constant 0 : i32
    %c0_i32_0 = arith.constant 0 : i32
    %c0_i32_1 = arith.constant 0 : i32
    return %c0_i32, %c0_i32_0 : i32, i32
  }
  func.func @transform_8(%arg0: i32, %arg1: memref<32xi32, #tpu.memory_space<smem>>, %arg2: memref<32xi32, #tpu.memory_space<smem>>, %arg3: memref<32xi32, #tpu.memory_space<smem>>) -> (i32, i32) {
    %c0_i32 = arith.constant 0 : i32
    %c0_i32_0 = arith.constant 0 : i32
    %c0_i32_1 = arith.constant 0 : i32
    return %c0_i32, %c0_i32_0 : i32, i32
  }
  func.func @transform_9(%arg0: i32, %arg1: memref<32xi32, #tpu.memory_space<smem>>, %arg2: memref<32xi32, #tpu.memory_space<smem>>, %arg3: memref<32xi32, #tpu.memory_space<smem>>) -> (i32, i32) {
    %c0_i32 = arith.constant 0 : i32
    %c0_i32_0 = arith.constant 0 : i32
    %c0_i32_1 = arith.constant 0 : i32
    return %c0_i32, %c0_i32_0 : i32, i32
  }
  func.func @transform_10(%arg0: i32, %arg1: memref<32xi32, #tpu.memory_space<smem>>, %arg2: memref<32xi32, #tpu.memory_space<smem>>, %arg3: memref<32xi32, #tpu.memory_space<smem>>) -> (i32, i32) {
    %c0_i32 = arith.constant 0 : i32
    %c0_i32_0 = arith.constant 0 : i32
    %c0_i32_1 = arith.constant 0 : i32
    return %c0_i32, %c0_i32_0 : i32, i32
  }
  func.func @transform_11(%arg0: i32, %arg1: memref<32xi32, #tpu.memory_space<smem>>, %arg2: memref<32xi32, #tpu.memory_space<smem>>, %arg3: memref<32xi32, #tpu.memory_space<smem>>) -> (i32, i32) {
    %c0_i32 = arith.constant 0 : i32
    %c0_i32_0 = arith.constant 0 : i32
    %c0_i32_1 = arith.constant 0 : i32
    return %c0_i32, %c0_i32_0 : i32, i32
  }
}

</mosaic_0001>

<llo_original>
// kernel: tpu_custom_call.1
$region0: #{tpu_custom_call.1}
  #allocation0 [shape = 'u32[]', space=smem, size = 0x4, offset = 0x4, fixed_abs, tag = 'smem constant byte address 0x4 - core index']
  #allocation1 [shape = 'u32[144,128]{1,0:T(1,128)}', space=vmem, size = 0x12000, scoped, tag = 'internal scratch']
  #allocation2 [shape = 'f32[40,128]{1,0:T(8,128)}', space=vmem, size = 0x5000, scoped, tag = 'scratch operand']
  #allocation3 [shape = 'f32[40,128]{1,0:T(8,128)}', space=vmem, size = 0x5000, scoped, tag = 'scratch operand']
  #allocation4 [shape = 'f32[8,128]{1,0:T(8,128)}', space=vmem, size = 0x1000, scoped, tag = 'scratch operand']
  #allocation5 [shape = 'f32[8,128]{1,0:T(8,128)}', space=vmem, size = 0x1000, scoped, tag = 'scratch operand']
  #allocation6 [shape = 'f32[8,128]{1,0:T(8,128)}', space=vmem, size = 0x1000, scoped, tag = 'scratch operand']
  #allocation7 [shape = 'f32[8,128]{1,0:T(8,128)}', space=vmem, size = 0x1000, scoped, tag = 'scratch operand']
  #allocation8 [shape = 'f32[8,128]{1,0:T(8,128)}', space=vmem, size = 0x1000, scoped, tag = 'scratch operand']
  #allocation9 [shape = 's32[1]{0}', space=sflag, size = 0x4, scoped, tag = 'scoped memory for tpu_custom_call.1']
  #allocation10 [shape = 'u8[512]{0}', space=smem, size = 0x200, scoped, tag = 'prefetched SMEM operand 0']
  #allocation11 [shape = 'u8[512]{0}', space=smem, size = 0x200, scoped, tag = 'prefetched SMEM operand 1']
  #allocation12 [shape = 'u8[512]{0}', space=smem, size = 0x200, scoped, tag = 'prefetched SMEM operand 2']
  #allocation13 [shape = 'f32[1,1]{1,0:T(1,128)S(1)}', space=vmem, size = 0x200, scoped, tag = 'scoped memory for tpu_custom_call.1']
  %s0 = inlined_call_operand.vmem [shape: s32[32], index: 0, kind: input, shape index: {}]
  %s1 = inlined_call_operand.vmem [shape: s32[32], index: 1, kind: input, shape index: {}]
  %s2 = inlined_call_operand.vmem [shape: s32[32], index: 2, kind: input, shape index: {}]
  %s3 = inlined_call_operand.vmem [shape: f32[16,128], index: 3, kind: input, shape index: {}]
  %s4 = inlined_call_operand.hbm [shape: f32[128,640], index: 4, kind: input, shape index: {}]
  %s5 = inlined_call_operand.hbm [shape: f32[128,640], index: 5, kind: input, shape index: {}]
  %s6 = inlined_call_operand.hbm [shape: f32[128,640], index: 6, kind: input, shape index: {}]
  %s7 = inlined_call_operand.vmem [shape: f32[1,640], index: 7, kind: input, shape index: {}]
  %s8 = inlined_call_operand.vmem [shape: f32[128,64], index: 8, kind: input, shape index: {}]
  %s9 = inlined_call_operand.vmem [shape: f32[1,64], index: 9, kind: input, shape index: {}]
  %s10 = inlined_call_operand.vmem [shape: f32[1,64], index: 10, kind: input, shape index: {}]
  %s11 = inlined_call_operand.<no memory space> [shape: f32[1,1], index: 11, kind: input, shape index: {}]
  %s12 = inlined_call_operand.hbm [shape: f32[1,1], index: 12, kind: output, shape index: {0}]
  %s13 = inlined_call_operand.hbm [shape: f32[1,128], index: 13, kind: output, shape index: {1}]
  %s14 = inlined_call_operand.hbm [shape: f32[1,128], index: 14, kind: output, shape index: {2}]
  %15 = xla_tuple %s12, %s13, %s14
  %s16 = sld [smem:[#allocation0]]
  $region105: #{tpu_custom_call.1} parent=0
    _
  %s18 = ssub.s32 1, %s16
  %s19 = scalar_select 0, %s18, %s16
  %s20 = sshll.u32 %s0, 4
  %s21 = int_to_ptr.vmem [resolvable:$true] %s20
  %23 = dma.vmem_to_smem %s21, 16, [#allocation10], [#allocation9]
  %s24 = sshll.u32 %s1, 4
  %s25 = int_to_ptr.vmem [resolvable:$true] %s24
  %27 = dma.vmem_to_smem %s25, 16, [#allocation11], [#allocation9]
  %s28 = sshll.u32 %s2, 4
  %s29 = int_to_ptr.vmem [resolvable:$true] %s28
  %31 = dma.vmem_to_smem %s29, 16, [#allocation12], [#allocation9]
  %v32 = vstv %s11
  %33 = vst [vmem:[#allocation13] sm:$0x1] %v32
  %34 = dma.done [#allocation9], 48
  %35 = sfence
  $region1: #{tpu_custom_call.1} parent=0
    #allocation14 [shape = 'u8[327680]{0}', space=vmem, size = 0x50000, scoped, tag = 'input window, operand 4, single buffered']
    #allocation15 [shape = 's32[2]{0}', space=sflag, size = 0x8, scoped, tag = 'scoped memory for tpu_custom_call.1']
    #allocation16 [shape = 's32[2]{0}', space=sflag, size = 0x8, scoped, tag = 'scoped memory for tpu_custom_call.1']
    #allocation17 [shape = 'u8[327680]{0}', space=vmem, size = 0x50000, scoped, tag = 'input window, operand 5, single buffered']
    #allocation18 [shape = 's32[1]{0}', space=sflag, size = 0x4, scoped, tag = 'scoped memory for tpu_custom_call.1']
    #allocation19 [shape = 'u8[327680]{0}', space=vmem, size = 0x50000, scoped, tag = 'input window, operand 6, single buffered']
    #allocation20 [shape = 'u8[512]{0}', space=vmem, size = 0x400, scoped, tag = 'output window, operand 0, single buffered']
    #allocation21 [shape = 'u8[512]{0}', space=vmem, size = 0x400, scoped, tag = 'output window, operand 1, single buffered']
    #allocation22 [shape = 's32[1]{0}', space=sflag, size = 0x4, scoped, tag = 'scoped memory for tpu_custom_call.1']
    #allocation23 [shape = 'u8[512]{0}', space=vmem, size = 0x400, scoped, tag = 'output window, operand 2, single buffered']
    %36 = vsyncpa [#allocation15], 0
    %37 = vsyncpa [#allocation18], 0
    %38 = vsyncpa [#allocation16], 0
    %39 = vsyncpa [#allocation22], 0
    loop: start=0, step=1, limit=6
    $region2: #{tpu_custom_call.1} parent=1 // loop_pre_header
      _
    $region3: #{tpu_custom_call.1} parent=1 // loop_header
      %s41 = sphi 0, %s45
      %p42 = scmp.ge.s32.totalorder %s41, 6
      %s49 = sphi 0, %s49
      %s51 = sphi 0, %s49
      %s52 = sphi 0, %s51
      %s66 = sphi 0, %s52
      %s70 = sphi 0, %s70
      %s72 = sphi 0, %s70
      %s73 = sphi 0, %s72
      %s87 = sphi 0, %s73
      %s91 = sphi 0, %s91
      %s93 = sphi 0, %s91
      %s94 = sphi 0, %s93
      %s108 = sphi 0, %s94
      %s112 = sphi 0, %s112
      %s114 = sphi 0, %s112
      %s115 = sphi 0, %s114
      %s129 = sphi 0, %s115
      %s133 = sphi 0, %s133
      %s135 = sphi 0, %s133
      %s136 = sphi 0, %s135
      %s150 = sphi 0, %s136
      %s154 = sphi 0, %s154
      %s156 = sphi 0, %s154
      %s157 = sphi 0, %s156
      %s171 = sphi 0, %s157
      %s175 = sphi 0, %s175
      %s177 = sphi 0, %s175
      %s178 = sphi 0, %s177
      %s192 = sphi 0, %s178
      %s196 = sphi 0, %s196
      %s198 = sphi 0, %s196
      %s199 = sphi 0, %s198
      %s213 = sphi 0, %s199
      %s217 = sphi 0, %s217
      %s219 = sphi 0, %s217
      %s220 = sphi 0, %s219
      %s234 = sphi 0, %s220
      %s238 = sphi 0, %s238
      %s240 = sphi 0, %s238
      %s241 = sphi 0, %s240
      %s255 = sphi 0, %s241
      %s259 = sphi 0, %s259
      %s261 = sphi 0, %s259
      %s262 = sphi 0, %s261
      %s276 = sphi 0, %s262
      %s280 = sphi 0, %s280
      %s282 = sphi 0, %s280
      %s283 = sphi 0, %s282
      %s297 = sphi 0, %s283
    $region4: #{tpu_custom_call.1} parent=1 // loop_header_branch
      %44 = sbr.rel (%p42) target = $region8
    $region5: #{tpu_custom_call.1} parent=1 // loop_body
      %s46 = ssub.s32 %s41, 1
      %s47 = ssub.s32 %s41, 2
      %s48 = sadd.s32 %s41, 1
      %s50 = sadd.s32 %s49, 1
      %p53 = scmp.eq.s32.totalorder %s41, 3
      %p54 = scmp.ne.s32.totalorder %s49, %s51
      %p55 = scmp.eq.s32.totalorder %s41, 0
      %p56 = por %p54, %p55
      %p57 = scmp.ne.s32.totalorder %s49, %s51
      %p58 = scmp.eq.s32.totalorder %s46, 3
      %p59 = por %p57, %p58
      %p60 = scmp.ne.s32.totalorder %s51, %s52
      %p61 = scmp.eq.s32.totalorder %s46, 0
      %p62 = por %p60, %p61
      %p63 = scmp.ne.s32.totalorder %s51, %s52
      %p64 = scmp.eq.s32.totalorder %s47, 3
      %p65 = por %p63, %p64
      %p67 = scmp.ne.s32.totalorder %s52, %s66
      %p68 = scmp.eq.s32.totalorder %s47, 0
      %p69 = por %p67, %p68
      %s71 = sadd.s32 %s70, 1
      %p74 = scmp.eq.s32.totalorder %s41, 3
      %p75 = scmp.ne.s32.totalorder %s70, %s72
      %p76 = scmp.eq.s32.totalorder %s41, 0
      %p77 = por %p75, %p76
      %p78 = scmp.ne.s32.totalorder %s70, %s72
      %p79 = scmp.eq.s32.totalorder %s46, 3
      %p80 = por %p78, %p79
      %p81 = scmp.ne.s32.totalorder %s72, %s73
      %p82 = scmp.eq.s32.totalorder %s46, 0
      %p83 = por %p81, %p82
      %p84 = scmp.ne.s32.totalorder %s72, %s73
      %p85 = scmp.eq.s32.totalorder %s47, 3
      %p86 = por %p84, %p85
      %p88 = scmp.ne.s32.totalorder %s73, %s87
      %p89 = scmp.eq.s32.totalorder %s47, 0
      %p90 = por %p88, %p89
      %s92 = sadd.s32 %s91, 1
      %p95 = scmp.eq.s32.totalorder %s41, 3
      %p96 = scmp.ne.s32.totalorder %s91, %s93
      %p97 = scmp.eq.s32.totalorder %s41, 0
      %p98 = por %p96, %p97
      %p99 = scmp.ne.s32.totalorder %s91, %s93
      %p100 = scmp.eq.s32.totalorder %s46, 3
      %p101 = por %p99, %p100
      %p102 = scmp.ne.s32.totalorder %s93, %s94
      %p103 = scmp.eq.s32.totalorder %s46, 0
      %p104 = por %p102, %p103
      %p105 = scmp.ne.s32.totalorder %s93, %s94
      %p106 = scmp.eq.s32.totalorder %s47, 3
      %p107 = por %p105, %p106
      %p109 = scmp.ne.s32.totalorder %s94, %s108
      %p110 = scmp.eq.s32.totalorder %s47, 0
      %p111 = por %p109, %p110
      %s113 = sadd.s32 %s112, 1
      %p116 = scmp.eq.s32.totalorder %s41, 3
      %p117 = scmp.ne.s32.totalorder %s112, %s114
      %p118 = scmp.eq.s32.totalorder %s41, 0
      %p119 = por %p117, %p118
      %p120 = scmp.ne.s32.totalorder %s112, %s114
      %p121 = scmp.eq.s32.totalorder %s46, 3
      %p122 = por %p120, %p121
      %p123 = scmp.ne.s32.totalorder %s114, %s115
      %p124 = scmp.eq.s32.totalorder %s46, 0
      %p125 = por %p123, %p124
      %p126 = scmp.ne.s32.totalorder %s114, %s115
      %p127 = scmp.eq.s32.totalorder %s47, 3
      %p128 = por %p126, %p127
      %p130 = scmp.ne.s32.totalorder %s115, %s129
      %p131 = scmp.eq.s32.totalorder %s47, 0
      %p132 = por %p130, %p131
      %s134 = sadd.s32 %s133, 1
      %p137 = scmp.eq.s32.totalorder %s41, 3
      %p138 = scmp.ne.s32.totalorder %s133, %s135
      %p139 = scmp.eq.s32.totalorder %s41, 0
      %p140 = por %p138, %p139
      %p141 = scmp.ne.s32.totalorder %s133, %s135
      %p142 = scmp.eq.s32.totalorder %s46, 3
      %p143 = por %p141, %p142
      %p144 = scmp.ne.s32.totalorder %s135, %s136
      %p145 = scmp.eq.s32.totalorder %s46, 0
      %p146 = por %p144, %p145
      %p147 = scmp.ne.s32.totalorder %s135, %s136
      %p148 = scmp.eq.s32.totalorder %s47, 3
      %p149 = por %p147, %p148
      %p151 = scmp.ne.s32.totalorder %s136, %s150
      %p152 = scmp.eq.s32.totalorder %s47, 0
      %p153 = por %p151, %p152
      %s155 = sadd.s32 %s154, 1
      %p158 = scmp.eq.s32.totalorder %s41, 3
      %p159 = scmp.ne.s32.totalorder %s154, %s156
      %p160 = scmp.eq.s32.totalorder %s41, 0
      %p161 = por %p159, %p160
      %p162 = scmp.ne.s32.totalorder %s154, %s156
      %p163 = scmp.eq.s32.totalorder %s46, 3
      %p164 = por %p162, %p163
      %p165 = scmp.ne.s32.totalorder %s156, %s157
      %p166 = scmp.eq.s32.totalorder %s46, 0
      %p167 = por %p165, %p166
      %p168 = scmp.ne.s32.totalorder %s156, %s157
      %p169 = scmp.eq.s32.totalorder %s47, 3
      %p170 = por %p168, %p169
      %p172 = scmp.ne.s32.totalorder %s157, %s171
      %p173 = scmp.eq.s32.totalorder %s47, 0
      %p174 = por %p172, %p173
      %s176 = sadd.s32 %s175, 1
      %p179 = scmp.eq.s32.totalorder %s41, 3
      %p180 = scmp.ne.s32.totalorder %s175, %s177
      %p181 = scmp.eq.s32.totalorder %s41, 0
      %p182 = por %p180, %p181
      %p183 = scmp.ne.s32.totalorder %s175, %s177
      %p184 = scmp.eq.s32.totalorder %s46, 3
      %p185 = por %p183, %p184
      %p186 = scmp.ne.s32.totalorder %s177, %s178
      %p187 = scmp.eq.s32.totalorder %s46, 0
      %p188 = por %p186, %p187
      %p189 = scmp.ne.s32.totalorder %s177, %s178
      %p190 = scmp.eq.s32.totalorder %s47, 3
      %p191 = por %p189, %p190
      %p193 = scmp.ne.s32.totalorder %s178, %s192
      %p194 = scmp.eq.s32.totalorder %s47, 0
      %p195 = por %p193, %p194
      %s197 = sadd.s32 %s196, 1
      %p200 = scmp.eq.s32.totalorder %s41, 3
      %p201 = scmp.ne.s32.totalorder %s196, %s198
      %p202 = scmp.eq.s32.totalorder %s41, 0
      %p203 = por %p201, %p202
      %p204 = scmp.ne.s32.totalorder %s196, %s198
      %p205 = scmp.eq.s32.totalorder %s46, 3
      %p206 = por %p204, %p205
      %p207 = scmp.ne.s32.totalorder %s198, %s199
      %p208 = scmp.eq.s32.totalorder %s46, 0
      %p209 = por %p207, %p208
      %p210 = scmp.ne.s32.totalorder %s198, %s199
      %p211 = scmp.eq.s32.totalorder %s47, 3
      %p212 = por %p210, %p211
      %p214 = scmp.ne.s32.totalorder %s199, %s213
      %p215 = scmp.eq.s32.totalorder %s47, 0
      %p216 = por %p214, %p215
      %s218 = sadd.s32 %s217, 1
      %p221 = scmp.eq.s32.totalorder %s41, 3
      %p222 = scmp.ne.s32.totalorder %s217, %s219
      %p223 = scmp.eq.s32.totalorder %s41, 0
      %p224 = por %p222, %p223
      %p225 = scmp.ne.s32.totalorder %s217, %s219
      %p226 = scmp.eq.s32.totalorder %s46, 3
      %p227 = por %p225, %p226
      %p228 = scmp.ne.s32.totalorder %s219, %s220
      %p229 = scmp.eq.s32.totalorder %s46, 0
      %p230 = por %p228, %p229
      %p231 = scmp.ne.s32.totalorder %s219, %s220
      %p232 = scmp.eq.s32.totalorder %s47, 3
      %p233 = por %p231, %p232
      %p235 = scmp.ne.s32.totalorder %s220, %s234
      %p236 = scmp.eq.s32.totalorder %s47, 0
      %p237 = por %p235, %p236
      %s239 = sadd.s32 %s238, 1
      %p242 = scmp.eq.s32.totalorder %s41, 3
      %p243 = scmp.ne.s32.totalorder %s238, %s240
      %p244 = scmp.eq.s32.totalorder %s41, 0
      %p245 = por %p243, %p244
      %p246 = scmp.ne.s32.totalorder %s238, %s240
      %p247 = scmp.eq.s32.totalorder %s46, 3
      %p248 = por %p246, %p247
      %p249 = scmp.ne.s32.totalorder %s240, %s241
      %p250 = scmp.eq.s32.totalorder %s46, 0
      %p251 = por %p249, %p250
      %p252 = scmp.ne.s32.totalorder %s240, %s241
      %p253 = scmp.eq.s32.totalorder %s47, 3
      %p254 = por %p252, %p253
      %p256 = scmp.ne.s32.totalorder %s241, %s255
      %p257 = scmp.eq.s32.totalorder %s47, 0
      %p258 = por %p256, %p257
      %s260 = sadd.s32 %s259, 1
      %p263 = scmp.eq.s32.totalorder %s41, 3
      %p264 = scmp.ne.s32.totalorder %s259, %s261
      %p265 = scmp.eq.s32.totalorder %s41, 0
      %p266 = por %p264, %p265
      %p267 = scmp.ne.s32.totalorder %s259, %s261
      %p268 = scmp.eq.s32.totalorder %s46, 3
      %p269 = por %p267, %p268
      %p270 = scmp.ne.s32.totalorder %s261, %s262
      %p271 = scmp.eq.s32.totalorder %s46, 0
      %p272 = por %p270, %p271
      %p273 = scmp.ne.s32.totalorder %s261, %s262
      %p274 = scmp.eq.s32.totalorder %s47, 3
      %p275 = por %p273, %p274
      %p277 = scmp.ne.s32.totalorder %s262, %s276
      %p278 = scmp.eq.s32.totalorder %s47, 0
      %p279 = por %p277, %p278
      %s281 = sadd.s32 %s280, 1
      %p284 = scmp.eq.s32.totalorder %s41, 3
      %p285 = scmp.ne.s32.totalorder %s280, %s282
      %p286 = scmp.eq.s32.totalorder %s41, 0
      %p287 = por %p285, %p286
      %p288 = scmp.ne.s32.totalorder %s280, %s282
      %p289 = scmp.eq.s32.totalorder %s46, 3
      %p290 = por %p288, %p289
      %p291 = scmp.ne.s32.totalorder %s282, %s283
      %p292 = scmp.eq.s32.totalorder %s46, 0
      %p293 = por %p291, %p292
      %p294 = scmp.ne.s32.totalorder %s282, %s283
      %p295 = scmp.eq.s32.totalorder %s47, 3
      %p296 = por %p294, %p295
      %p298 = scmp.ne.s32.totalorder %s283, %s297
      %p299 = scmp.eq.s32.totalorder %s47, 0
      %p300 = por %p298, %p299
      %p301 = scmp.le.s32.totalorder 1, %s41
      %p302 = scmp.lt.s32.totalorder %s41, 5
      %p303 = pnand %p301, %p302
      %p304 = pneg %p303
      // Predicated region
      $region9: #{tpu_custom_call.1} parent=5 // pred_check
        _
      $region10: #{tpu_custom_call.1} parent=5 // pred_check_branch
        %306 = sbr.rel (%p303) target = $region12
      $region11: #{tpu_custom_call.1} parent=5 // pred_region
        %s307 = ssub.s32 %s41, 1
        // Predicated region
        $region13: #{tpu_custom_call.1} parent=11 // pred_check
          %p308 = pneg %p62
        $region14: #{tpu_custom_call.1} parent=11 // pred_check_branch
          %310 = sbr.rel (%p308) target = $region16
        $region15: #{tpu_custom_call.1} parent=11 // pred_region
          _
        $region16: #{tpu_custom_call.1} parent=11 // pred_fallthru
          _
        // Predicated region
        $region17: #{tpu_custom_call.1} parent=11 // pred_check
          %p311 = pneg %p83
        $region18: #{tpu_custom_call.1} parent=11 // pred_check_branch
          %313 = sbr.rel (%p311) target = $region20
        $region19: #{tpu_custom_call.1} parent=11 // pred_region
          %s315 = ssub.s32 10240, 10240
          %316 = vsyncadd [#allocation15], %s315
          %s317 = sshll.u32 [#allocation14], 4
          %s318 = int_to_ptr.vmem [resolvable:$true] %s317
          %323 = dma.hbm_to_vmem [thread:$0]  %s4, 10240, %s318, [#allocation15], 640, 640, 40
        $region20: #{tpu_custom_call.1} parent=11 // pred_fallthru
          _
        // Predicated region
        $region21: #{tpu_custom_call.1} parent=11 // pred_check
          %p324 = pneg %p104
        $region22: #{tpu_custom_call.1} parent=11 // pred_check_branch
          %326 = sbr.rel (%p324) target = $region24
        $region23: #{tpu_custom_call.1} parent=11 // pred_region
          %s328 = ssub.s32 10240, 10240
          %329 = vsyncadd [#allocation18], %s328
          %s330 = sshll.u32 [#allocation17], 4
          %s331 = int_to_ptr.vmem [resolvable:$true] %s330
          %336 = dma.hbm_to_vmem [thread:$0]  %s5, 10240, %s331, [#allocation18], 640, 640, 40
        $region24: #{tpu_custom_call.1} parent=11 // pred_fallthru
          _
        // Predicated region
        $region25: #{tpu_custom_call.1} parent=11 // pred_check
          %p337 = pneg %p125
        $region26: #{tpu_custom_call.1} parent=11 // pred_check_branch
          %339 = sbr.rel (%p337) target = $region28
        $region27: #{tpu_custom_call.1} parent=11 // pred_region
          %s341 = ssub.s32 10240, 10240
          %342 = vsyncadd [#allocation18], %s341
          %s343 = sshll.u32 [#allocation19], 4
          %s344 = int_to_ptr.vmem [resolvable:$true] %s343
          %349 = dma.hbm_to_vmem [thread:$0]  %s6, 10240, %s344, [#allocation18], 640, 640, 40
        $region28: #{tpu_custom_call.1} parent=11 // pred_fallthru
          _
        // Predicated region
        $region29: #{tpu_custom_call.1} parent=11 // pred_check
          %p350 = pneg %p146
        $region30: #{tpu_custom_call.1} parent=11 // pred_check_branch
          %352 = sbr.rel (%p350) target = $region32
        $region31: #{tpu_custom_call.1} parent=11 // pred_region
          _
        $region32: #{tpu_custom_call.1} parent=11 // pred_fallthru
          _
        // Predicated region
        $region33: #{tpu_custom_call.1} parent=11 // pred_check
          %p353 = pneg %p167
        $region34: #{tpu_custom_call.1} parent=11 // pred_check_branch
          %355 = sbr.rel (%p353) target = $region36
        $region35: #{tpu_custom_call.1} parent=11 // pred_region
          _
        $region36: #{tpu_custom_call.1} parent=11 // pred_fallthru
          _
        // Predicated region
        $region37: #{tpu_custom_call.1} parent=11 // pred_check
          %p356 = pneg %p188
        $region38: #{tpu_custom_call.1} parent=11 // pred_check_branch
          %358 = sbr.rel (%p356) target = $region40
        $region39: #{tpu_custom_call.1} parent=11 // pred_region
          _
        $region40: #{tpu_custom_call.1} parent=11 // pred_fallthru
          _
        // Predicated region
        $region41: #{tpu_custom_call.1} parent=11 // pred_check
          %p359 = pneg %p209
        $region42: #{tpu_custom_call.1} parent=11 // pred_check_branch
          %361 = sbr.rel (%p359) target = $region44
        $region43: #{tpu_custom_call.1} parent=11 // pred_region
          _
        $region44: #{tpu_custom_call.1} parent=11 // pred_fallthru
          _
        // Predicated region
        $region45: #{tpu_custom_call.1} parent=11 // pred_check
          %p362 = pneg %p230
        $region46: #{tpu_custom_call.1} parent=11 // pred_check_branch
          %364 = sbr.rel (%p362) target = $region48
        $region47: #{tpu_custom_call.1} parent=11 // pred_region
          _
        $region48: #{tpu_custom_call.1} parent=11 // pred_fallthru
          _
      $region12: #{tpu_custom_call.1} parent=5 // pred_fallthru
        _
      %p365 = scmp.lt.s32.totalorder %s41, 4
      // Predicated region
      $region49: #{tpu_custom_call.1} parent=5 // pred_check
        %p366 = pneg %p365
      $region50: #{tpu_custom_call.1} parent=5 // pred_check_branch
        %368 = sbr.rel (%p366) target = $region52
      $region51: #{tpu_custom_call.1} parent=5 // pred_region
        _
      $region52: #{tpu_custom_call.1} parent=5 // pred_fallthru
        _
      %p369 = scmp.le.s32.totalorder 1, %s41
      %p370 = scmp.lt.s32.totalorder %s41, 5
      %p371 = pnand %p369, %p370
      %p372 = pneg %p371
      // Predicated region
      $region53: #{tpu_custom_call.1} parent=5 // pred_check
        _
      $region54: #{tpu_custom_call.1} parent=5 // pred_check_branch
        %374 = sbr.rel (%p371) target = $region56
      $region55: #{tpu_custom_call.1} parent=5 // pred_region
        %s375 = ssub.s32 %s41, 1
        // Predicated region
        $region57: #{tpu_custom_call.1} parent=55 // pred_check
          %p376 = pneg %p83
        $region58: #{tpu_custom_call.1} parent=55 // pred_check_branch
          %378 = sbr.rel (%p376) target = $region60
        $region59: #{tpu_custom_call.1} parent=55 // pred_region
          %379 = dma.done [#allocation15], 10240
        $region60: #{tpu_custom_call.1} parent=55 // pred_fallthru
          _
        // Predicated region
        $region61: #{tpu_custom_call.1} parent=55 // pred_check
          %p380 = pneg %p104
        $region62: #{tpu_custom_call.1} parent=55 // pred_check_branch
          %382 = sbr.rel (%p380) target = $region64
        $region63: #{tpu_custom_call.1} parent=55 // pred_region
          %383 = dma.done [#allocation18], 10240
        $region64: #{tpu_custom_call.1} parent=55 // pred_fallthru
          _
        // Predicated region
        $region65: #{tpu_custom_call.1} parent=55 // pred_check
          %p384 = pneg %p125
        $region66: #{tpu_custom_call.1} parent=55 // pred_check_branch
          %386 = sbr.rel (%p384) target = $region68
        $region67: #{tpu_custom_call.1} parent=55 // pred_region
          %387 = dma.done [#allocation18], 10240
        $region68: #{tpu_custom_call.1} parent=55 // pred_fallthru
          _
        %p388 = pneg %p62
        %p389 = pneg %p59
        %p390 = pneg %p83
        %p391 = pneg %p80
        %p392 = pneg %p104
        %p393 = pneg %p101
        %p394 = pneg %p125
        %p395 = pneg %p122
        %p396 = pneg %p146
        %p397 = pneg %p143
        %p398 = pneg %p167
        %p399 = pneg %p164
        %p400 = pneg %p188
        %p401 = pneg %p185
        %p402 = pneg %p209
        %p403 = pneg %p206
        %p404 = pneg %p230
        %p405 = pneg %p227
        %p406 = pneg %p251
        %p407 = pneg %p248
        %p408 = pneg %p272
        %p409 = pneg %p269
        %p410 = pneg %p293
        %p411 = pneg %p290
        %p412 = scmp.eq.s32.totalorder %s46, 0
        // Predicated region
        $region69: #{tpu_custom_call.1} parent=55 // pred_check
          %p413 = pneg %p412
        $region70: #{tpu_custom_call.1} parent=55 // pred_check_branch
          %415 = sbr.rel (%p413) target = $region72
        $region71: #{tpu_custom_call.1} parent=55 // pred_region
          %416 = vst [vmem:[#allocation2] sm:$0xff] 0.0
          %417 = vst [vmem:[#allocation3] sm:$0xff] 0.0
        $region72: #{tpu_custom_call.1} parent=55 // pred_fallthru
          _
        %s418 = smul.u32 %s46, 8
        %s419 = sld [smem:[#allocation10 + %s418]]
        %s420 = sld [smem:[#allocation11 + %s418]]
        %s421 = sld [smem:[#allocation12 + %s418]]
        %s422 = scalar_lea.vmem %s3, %s419
        %v423 = vld [vmem:[%s422] sm:$0x1]
        %424 = vst [vmem:[#allocation4] sm:$0x1] %v423
        %s425 = scalar_lea.vmem [#allocation2], %s420
        %v426 = vld [vmem:[%s425] sm:$0x1]
        %427 = vst [vmem:[#allocation5] sm:$0x1] %v426
        %s428 = scalar_lea.vmem [#allocation3], %s420
        %v429 = vld [vmem:[%s428] sm:$0x1]
        %430 = vst [vmem:[#allocation7] sm:$0x1] %v429
        %s431 = scalar_lea.vmem [#allocation2], %s421
        %v432 = vld [vmem:[%s431] sm:$0x1]
        %433 = vst [vmem:[#allocation6] sm:$0x1] %v432
        %s434 = scalar_lea.vmem [#allocation3], %s421
        %v435 = vld [vmem:[%s434] sm:$0x1]
        %436 = vst [vmem:[#allocation8] sm:$0x1] %v435
        %s437 = sadd.s32 %s418, 1
        %s438 = sld [smem:[#allocation10 + %s437]]
        %s439 = sld [smem:[#allocation11 + %s437]]
        %s440 = sld [smem:[#allocation12 + %s437]]
        %s441 = scalar_lea.vmem %s3, %s438
        %v442 = vld [vmem:[%s441] sm:$0x1]
        %443 = vst [vmem:[#allocation4 + $0x1] sm:$0x1] %v442
        %s444 = scalar_lea.vmem [#allocation2], %s439
        %v445 = vld [vmem:[%s444] sm:$0x1]
        %446 = vst [vmem:[#allocation5 + $0x1] sm:$0x1] %v445
        %s447 = scalar_lea.vmem [#allocation3], %s439
        %v448 = vld [vmem:[%s447] sm:$0x1]
        %449 = vst [vmem:[#allocation7 + $0x1] sm:$0x1] %v448
        %s450 = scalar_lea.vmem [#allocation2], %s440
        %v451 = vld [vmem:[%s450] sm:$0x1]
        %452 = vst [vmem:[#allocation6 + $0x1] sm:$0x1] %v451
        %s453 = scalar_lea.vmem [#allocation3], %s440
        %v454 = vld [vmem:[%s453] sm:$0x1]
        %455 = vst [vmem:[#allocation8 + $0x1] sm:$0x1] %v454
        %s456 = sadd.s32 %s418, 2
        %s457 = sld [smem:[#allocation10 + %s456]]
        %s458 = sld [smem:[#allocation11 + %s456]]
        %s459 = sld [smem:[#allocation12 + %s456]]
        %s460 = scalar_lea.vmem %s3, %s457
        %v461 = vld [vmem:[%s460] sm:$0x1]
        %462 = vst [vmem:[#allocation4 + $0x2] sm:$0x1] %v461
        %s463 = scalar_lea.vmem [#allocation2], %s458
        %v464 = vld [vmem:[%s463] sm:$0x1]
        %465 = vst [vmem:[#allocation5 + $0x2] sm:$0x1] %v464
        %s466 = scalar_lea.vmem [#allocation3], %s458
        %v467 = vld [vmem:[%s466] sm:$0x1]
        %468 = vst [vmem:[#allocation7 + $0x2] sm:$0x1] %v467
        %s469 = scalar_lea.vmem [#allocation2], %s459
        %v470 = vld [vmem:[%s469] sm:$0x1]
        %471 = vst [vmem:[#allocation6 + $0x2] sm:$0x1] %v470
        %s472 = scalar_lea.vmem [#allocation3], %s459
        %v473 = vld [vmem:[%s472] sm:$0x1]
        %474 = vst [vmem:[#allocation8 + $0x2] sm:$0x1] %v473
        %s475 = sadd.s32 %s418, 3
        %s476 = sld [smem:[#allocation10 + %s475]]
        %s477 = sld [smem:[#allocation11 + %s475]]
        %s478 = sld [smem:[#allocation12 + %s475]]
        %s479 = scalar_lea.vmem %s3, %s476
        %v480 = vld [vmem:[%s479] sm:$0x1]
        %481 = vst [vmem:[#allocation4 + $0x3] sm:$0x1] %v480
        %s482 = scalar_lea.vmem [#allocation2], %s477
        %v483 = vld [vmem:[%s482] sm:$0x1]
        %484 = vst [vmem:[#allocation5 + $0x3] sm:$0x1] %v483
        %s485 = scalar_lea.vmem [#allocation3], %s477
        %v486 = vld [vmem:[%s485] sm:$0x1]
        %487 = vst [vmem:[#allocation7 + $0x3] sm:$0x1] %v486
        %s488 = scalar_lea.vmem [#allocation2], %s478
        %v489 = vld [vmem:[%s488] sm:$0x1]
        %490 = vst [vmem:[#allocation6 + $0x3] sm:$0x1] %v489
        %s491 = scalar_lea.vmem [#allocation3], %s478
        %v492 = vld [vmem:[%s491] sm:$0x1]
        %493 = vst [vmem:[#allocation8 + $0x3] sm:$0x1] %v492
        %s494 = sadd.s32 %s418, 4
        %s495 = sld [smem:[#allocation10 + %s494]]
        %s496 = sld [smem:[#allocation11 + %s494]]
        %s497 = sld [smem:[#allocation12 + %s494]]
        %s498 = scalar_lea.vmem %s3, %s495
        %v499 = vld [vmem:[%s498] sm:$0x1]
        %500 = vst [vmem:[#allocation4 + $0x4] sm:$0x1] %v499
        %s501 = scalar_lea.vmem [#allocation2], %s496
        %v502 = vld [vmem:[%s501] sm:$0x1]
        %503 = vst [vmem:[#allocation5 + $0x4] sm:$0x1] %v502
        %s504 = scalar_lea.vmem [#allocation3], %s496
        %v505 = vld [vmem:[%s504] sm:$0x1]
        %506 = vst [vmem:[#allocation7 + $0x4] sm:$0x1] %v505
        %s507 = scalar_lea.vmem [#allocation2], %s497
        %v508 = vld [vmem:[%s507] sm:$0x1]
        %509 = vst [vmem:[#allocation6 + $0x4] sm:$0x1] %v508
        %s510 = scalar_lea.vmem [#allocation3], %s497
        %v511 = vld [vmem:[%s510] sm:$0x1]
        %512 = vst [vmem:[#allocation8 + $0x4] sm:$0x1] %v511
        %s513 = sadd.s32 %s418, 5
        %s514 = sld [smem:[#allocation10 + %s513]]
        %s515 = sld [smem:[#allocation11 + %s513]]
        %s516 = sld [smem:[#allocation12 + %s513]]
        %s517 = scalar_lea.vmem %s3, %s514
        %v518 = vld [vmem:[%s517] sm:$0x1]
        %519 = vst [vmem:[#allocation4 + $0x5] sm:$0x1] %v518
        %s520 = scalar_lea.vmem [#allocation2], %s515
        %v521 = vld [vmem:[%s520] sm:$0x1]
        %522 = vst [vmem:[#allocation5 + $0x5] sm:$0x1] %v521
        %s523 = scalar_lea.vmem [#allocation3], %s515
        %v524 = vld [vmem:[%s523] sm:$0x1]
        %525 = vst [vmem:[#allocation7 + $0x5] sm:$0x1] %v524
        %s526 = scalar_lea.vmem [#allocation2], %s516
        %v527 = vld [vmem:[%s526] sm:$0x1]
        %528 = vst [vmem:[#allocation6 + $0x5] sm:$0x1] %v527
        %s529 = scalar_lea.vmem [#allocation3], %s516
        %v530 = vld [vmem:[%s529] sm:$0x1]
        %531 = vst [vmem:[#allocation8 + $0x5] sm:$0x1] %v530
        %s532 = sadd.s32 %s418, 6
        %s533 = sld [smem:[#allocation10 + %s532]]
        %s534 = sld [smem:[#allocation11 + %s532]]
        %s535 = sld [smem:[#allocation12 + %s532]]
        %s536 = scalar_lea.vmem %s3, %s533
        %v537 = vld [vmem:[%s536] sm:$0x1]
        %538 = vst [vmem:[#allocation4 + $0x6] sm:$0x1] %v537
        %s539 = scalar_lea.vmem [#allocation2], %s534
        %v540 = vld [vmem:[%s539] sm:$0x1]
        %541 = vst [vmem:[#allocation5 + $0x6] sm:$0x1] %v540
        %s542 = scalar_lea.vmem [#allocation3], %s534
        %v543 = vld [vmem:[%s542] sm:$0x1]
        %544 = vst [vmem:[#allocation7 + $0x6] sm:$0x1] %v543
        %s545 = scalar_lea.vmem [#allocation2], %s535
        %v546 = vld [vmem:[%s545] sm:$0x1]
        %547 = vst [vmem:[#allocation6 + $0x6] sm:$0x1] %v546
        %s548 = scalar_lea.vmem [#allocation3], %s535
        %v549 = vld [vmem:[%s548] sm:$0x1]
        %550 = vst [vmem:[#allocation8 + $0x6] sm:$0x1] %v549
        %s551 = sadd.s32 %s418, 7
        %s552 = sld [smem:[#allocation10 + %s551]]
        %s553 = sld [smem:[#allocation11 + %s551]]
        %s554 = sld [smem:[#allocation12 + %s551]]
        %s555 = scalar_lea.vmem %s3, %s552
        %v556 = vld [vmem:[%s555] sm:$0x1]
        %557 = vst [vmem:[#allocation4 + $0x7] sm:$0x1] %v556
        %s558 = scalar_lea.vmem [#allocation2], %s553
        %v559 = vld [vmem:[%s558] sm:$0x1]
        %560 = vst [vmem:[#allocation5 + $0x7] sm:$0x1] %v559
        %s561 = scalar_lea.vmem [#allocation3], %s553
        %v562 = vld [vmem:[%s561] sm:$0x1]
        %563 = vst [vmem:[#allocation7 + $0x7] sm:$0x1] %v562
        %s564 = scalar_lea.vmem [#allocation2], %s554
        %v565 = vld [vmem:[%s564] sm:$0x1]
        %566 = vst [vmem:[#allocation6 + $0x7] sm:$0x1] %v565
        %s567 = scalar_lea.vmem [#allocation3], %s554
        %v568 = vld [vmem:[%s567] sm:$0x1]
        %569 = vst [vmem:[#allocation8 + $0x7] sm:$0x1] %v568
        %v570 = vld [vmem:[#allocation4] sm:$0xff]
        %v571 = vld [vmem:[#allocation5] sm:$0xff]
        %v572 = vld [vmem:[#allocation6] sm:$0xff]
        %v573 = vld [vmem:[#allocation14] sm:$0xff]
        %v574 = vld [vmem:[#allocation14 + $0x8] sm:$0xff]
        %v575 = vld [vmem:[#allocation14 + $0x10] sm:$0xff]
        %v576 = vld [vmem:[#allocation14 + $0x18] sm:$0xff]
        %v577 = vld [vmem:[#allocation14 + $0x20] sm:$0xff]
        %v578 = vld [vmem:[#allocation14 + $0x28] sm:$0xff]
        %v579 = vld [vmem:[#allocation14 + $0x30] sm:$0xff]
        %v580 = vld [vmem:[#allocation14 + $0x38] sm:$0xff]
        %v581 = vld [vmem:[#allocation14 + $0x40] sm:$0xff]
        %v582 = vld [vmem:[#allocation14 + $0x48] sm:$0xff]
        %v583 = vld [vmem:[#allocation14 + $0x50] sm:$0xff]
        %v584 = vld [vmem:[#allocation14 + $0x58] sm:$0xff]
        %v585 = vld [vmem:[#allocation14 + $0x60] sm:$0xff]
        %v586 = vld [vmem:[#allocation14 + $0x68] sm:$0xff]
        %v587 = vld [vmem:[#allocation14 + $0x70] sm:$0xff]
        %v588 = vld [vmem:[#allocation14 + $0x78] sm:$0xff]
        %v589 = vld [vmem:[#allocation14 + $0x80] sm:$0xff]
        %v590 = vld [vmem:[#allocation14 + $0x88] sm:$0xff]
        %v591 = vld [vmem:[#allocation14 + $0x90] sm:$0xff]
        %v592 = vld [vmem:[#allocation14 + $0x98] sm:$0xff]
        %v593 = vld [vmem:[#allocation14 + $0xa0] sm:$0xff]
        %v594 = vld [vmem:[#allocation14 + $0xa8] sm:$0xff]
        %v595 = vld [vmem:[#allocation14 + $0xb0] sm:$0xff]
        %v596 = vld [vmem:[#allocation14 + $0xb8] sm:$0xff]
        %v597 = vld [vmem:[#allocation14 + $0xc0] sm:$0xff]
        %v598 = vld [vmem:[#allocation14 + $0xc8] sm:$0xff]
        %v599 = vld [vmem:[#allocation14 + $0xd0] sm:$0xff]
        %v600 = vld [vmem:[#allocation14 + $0xd8] sm:$0xff]
        %v601 = vld [vmem:[#allocation14 + $0xe0] sm:$0xff]
        %v602 = vld [vmem:[#allocation14 + $0xe8] sm:$0xff]
        %v603 = vld [vmem:[#allocation14 + $0xf0] sm:$0xff]
        %v604 = vld [vmem:[#allocation14 + $0xf8] sm:$0xff]
        %v605 = vld [vmem:[#allocation14 + $0x100] sm:$0xff]
        %v606 = vld [vmem:[#allocation14 + $0x108] sm:$0xff]
        %v607 = vld [vmem:[#allocation14 + $0x110] sm:$0xff]
        %v608 = vld [vmem:[#allocation14 + $0x118] sm:$0xff]
        %v609 = vld [vmem:[#allocation14 + $0x120] sm:$0xff]
        %v610 = vld [vmem:[#allocation14 + $0x128] sm:$0xff]
        %v611 = vld [vmem:[#allocation14 + $0x130] sm:$0xff]
        %v612 = vld [vmem:[#allocation14 + $0x138] sm:$0xff]
        %v613 = vld [vmem:[#allocation14 + $0x140] sm:$0xff]
        %v614 = vld [vmem:[#allocation14 + $0x148] sm:$0xff]
        %v615 = vld [vmem:[#allocation14 + $0x150] sm:$0xff]
        %v616 = vld [vmem:[#allocation14 + $0x158] sm:$0xff]
        %v617 = vld [vmem:[#allocation14 + $0x160] sm:$0xff]
        %v618 = vld [vmem:[#allocation14 + $0x168] sm:$0xff]
        %v619 = vld [vmem:[#allocation14 + $0x170] sm:$0xff]
        %v620 = vld [vmem:[#allocation14 + $0x178] sm:$0xff]
        %v621 = vld [vmem:[#allocation14 + $0x180] sm:$0xff]
        %v622 = vld [vmem:[#allocation14 + $0x188] sm:$0xff]
        %v623 = vld [vmem:[#allocation14 + $0x190] sm:$0xff]
        %v624 = vld [vmem:[#allocation14 + $0x198] sm:$0xff]
        %v625 = vld [vmem:[#allocation14 + $0x1a0] sm:$0xff]
        %v626 = vld [vmem:[#allocation14 + $0x1a8] sm:$0xff]
        %v627 = vld [vmem:[#allocation14 + $0x1b0] sm:$0xff]
        %v628 = vld [vmem:[#allocation14 + $0x1b8] sm:$0xff]
        %v629 = vld [vmem:[#allocation14 + $0x1c0] sm:$0xff]
        %v630 = vld [vmem:[#allocation14 + $0x1c8] sm:$0xff]
        %v631 = vld [vmem:[#allocation14 + $0x1d0] sm:$0xff]
        %v632 = vld [vmem:[#allocation14 + $0x1d8] sm:$0xff]
        %v633 = vld [vmem:[#allocation14 + $0x1e0] sm:$0xff]
        %v634 = vld [vmem:[#allocation14 + $0x1e8] sm:$0xff]
        %v635 = vld [vmem:[#allocation14 + $0x1f0] sm:$0xff]
        %v636 = vld [vmem:[#allocation14 + $0x1f8] sm:$0xff]
        %v637 = vld [vmem:[#allocation14 + $0x200] sm:$0xff]
        %v638 = vld [vmem:[#allocation14 + $0x208] sm:$0xff]
        %v639 = vld [vmem:[#allocation14 + $0x210] sm:$0xff]
        %v640 = vld [vmem:[#allocation14 + $0x218] sm:$0xff]
        %v641 = vld [vmem:[#allocation14 + $0x220] sm:$0xff]
        %v642 = vld [vmem:[#allocation14 + $0x228] sm:$0xff]
        %v643 = vld [vmem:[#allocation14 + $0x230] sm:$0xff]
        %v644 = vld [vmem:[#allocation14 + $0x238] sm:$0xff]
        %v645 = vld [vmem:[#allocation14 + $0x240] sm:$0xff]
        %v646 = vld [vmem:[#allocation14 + $0x248] sm:$0xff]
        %v647 = vld [vmem:[#allocation14 + $0x250] sm:$0xff]
        %v648 = vld [vmem:[#allocation14 + $0x258] sm:$0xff]
        %v649 = vld [vmem:[#allocation14 + $0x260] sm:$0xff]
        %v650 = vld [vmem:[#allocation14 + $0x268] sm:$0xff]
        %v651 = vld [vmem:[#allocation14 + $0x270] sm:$0xff]
        %v652 = vld [vmem:[#allocation14 + $0x278] sm:$0xff]
        %v653 = vld [vmem:[#allocation17] sm:$0xff]
        %v654 = vld [vmem:[#allocation17 + $0x8] sm:$0xff]
        %v655 = vld [vmem:[#allocation17 + $0x10] sm:$0xff]
        %v656 = vld [vmem:[#allocation17 + $0x18] sm:$0xff]
        %v657 = vld [vmem:[#allocation17 + $0x20] sm:$0xff]
        %v658 = vld [vmem:[#allocation17 + $0x28] sm:$0xff]
        %v659 = vld [vmem:[#allocation17 + $0x30] sm:$0xff]
        %v660 = vld [vmem:[#allocation17 + $0x38] sm:$0xff]
        %v661 = vld [vmem:[#allocation17 + $0x40] sm:$0xff]
        %v662 = vld [vmem:[#allocation17 + $0x48] sm:$0xff]
        %v663 = vld [vmem:[#allocation17 + $0x50] sm:$0xff]
        %v664 = vld [vmem:[#allocation17 + $0x58] sm:$0xff]
        %v665 = vld [vmem:[#allocation17 + $0x60] sm:$0xff]
        %v666 = vld [vmem:[#allocation17 + $0x68] sm:$0xff]
        %v667 = vld [vmem:[#allocation17 + $0x70] sm:$0xff]
        %v668 = vld [vmem:[#allocation17 + $0x78] sm:$0xff]
        %v669 = vld [vmem:[#allocation17 + $0x80] sm:$0xff]
        %v670 = vld [vmem:[#allocation17 + $0x88] sm:$0xff]
        %v671 = vld [vmem:[#allocation17 + $0x90] sm:$0xff]
        %v672 = vld [vmem:[#allocation17 + $0x98] sm:$0xff]
        %v673 = vld [vmem:[#allocation17 + $0xa0] sm:$0xff]
        %v674 = vld [vmem:[#allocation17 + $0xa8] sm:$0xff]
        %v675 = vld [vmem:[#allocation17 + $0xb0] sm:$0xff]
        %v676 = vld [vmem:[#allocation17 + $0xb8] sm:$0xff]
        %v677 = vld [vmem:[#allocation17 + $0xc0] sm:$0xff]
        %v678 = vld [vmem:[#allocation17 + $0xc8] sm:$0xff]
        %v679 = vld [vmem:[#allocation17 + $0xd0] sm:$0xff]
        %v680 = vld [vmem:[#allocation17 + $0xd8] sm:$0xff]
        %v681 = vld [vmem:[#allocation17 + $0xe0] sm:$0xff]
        %v682 = vld [vmem:[#allocation17 + $0xe8] sm:$0xff]
        %v683 = vld [vmem:[#allocation17 + $0xf0] sm:$0xff]
        %v684 = vld [vmem:[#allocation17 + $0xf8] sm:$0xff]
        %v685 = vld [vmem:[#allocation17 + $0x100] sm:$0xff]
        %v686 = vld [vmem:[#allocation17 + $0x108] sm:$0xff]
        %v687 = vld [vmem:[#allocation17 + $0x110] sm:$0xff]
        %v688 = vld [vmem:[#allocation17 + $0x118] sm:$0xff]
        %v689 = vld [vmem:[#allocation17 + $0x120] sm:$0xff]
        %v690 = vld [vmem:[#allocation17 + $0x128] sm:$0xff]
        %v691 = vld [vmem:[#allocation17 + $0x130] sm:$0xff]
        %v692 = vld [vmem:[#allocation17 + $0x138] sm:$0xff]
        %v693 = vld [vmem:[#allocation17 + $0x140] sm:$0xff]
        %v694 = vld [vmem:[#allocation17 + $0x148] sm:$0xff]
        %v695 = vld [vmem:[#allocation17 + $0x150] sm:$0xff]
        %v696 = vld [vmem:[#allocation17 + $0x158] sm:$0xff]
        %v697 = vld [vmem:[#allocation17 + $0x160] sm:$0xff]
        %v698 = vld [vmem:[#allocation17 + $0x168] sm:$0xff]
        %v699 = vld [vmem:[#allocation17 + $0x170] sm:$0xff]
        %v700 = vld [vmem:[#allocation17 + $0x178] sm:$0xff]
        %v701 = vld [vmem:[#allocation17 + $0x180] sm:$0xff]
        %v702 = vld [vmem:[#allocation17 + $0x188] sm:$0xff]
        %v703 = vld [vmem:[#allocation17 + $0x190] sm:$0xff]
        %v704 = vld [vmem:[#allocation17 + $0x198] sm:$0xff]
        %v705 = vld [vmem:[#allocation17 + $0x1a0] sm:$0xff]
        %v706 = vld [vmem:[#allocation17 + $0x1a8] sm:$0xff]
        %v707 = vld [vmem:[#allocation17 + $0x1b0] sm:$0xff]
        %v708 = vld [vmem:[#allocation17 + $0x1b8] sm:$0xff]
        %v709 = vld [vmem:[#allocation17 + $0x1c0] sm:$0xff]
        %v710 = vld [vmem:[#allocation17 + $0x1c8] sm:$0xff]
        %v711 = vld [vmem:[#allocation17 + $0x1d0] sm:$0xff]
        %v712 = vld [vmem:[#allocation17 + $0x1d8] sm:$0xff]
        %v713 = vld [vmem:[#allocation17 + $0x1e0] sm:$0xff]
        %v714 = vld [vmem:[#allocation17 + $0x1e8] sm:$0xff]
        %v715 = vld [vmem:[#allocation17 + $0x1f0] sm:$0xff]
        %v716 = vld [vmem:[#allocation17 + $0x1f8] sm:$0xff]
        %v717 = vld [vmem:[#allocation17 + $0x200] sm:$0xff]
        %v718 = vld [vmem:[#allocation17 + $0x208] sm:$0xff]
        %v719 = vld [vmem:[#allocation17 + $0x210] sm:$0xff]
        %v720 = vld [vmem:[#allocation17 + $0x218] sm:$0xff]
        %v721 = vld [vmem:[#allocation17 + $0x220] sm:$0xff]
        %v722 = vld [vmem:[#allocation17 + $0x228] sm:$0xff]
        %v723 = vld [vmem:[#allocation17 + $0x230] sm:$0xff]
        %v724 = vld [vmem:[#allocation17 + $0x238] sm:$0xff]
        %v725 = vld [vmem:[#allocation17 + $0x240] sm:$0xff]
        %v726 = vld [vmem:[#allocation17 + $0x248] sm:$0xff]
        %v727 = vld [vmem:[#allocation17 + $0x250] sm:$0xff]
        %v728 = vld [vmem:[#allocation17 + $0x258] sm:$0xff]
        %v729 = vld [vmem:[#allocation17 + $0x260] sm:$0xff]
        %v730 = vld [vmem:[#allocation17 + $0x268] sm:$0xff]
        %v731 = vld [vmem:[#allocation17 + $0x270] sm:$0xff]
        %v732 = vld [vmem:[#allocation17 + $0x278] sm:$0xff]
        %733 = vmatprep.subr.mxu0 %v654
        %734 = vmatpush1.msra.mxu0 %v653
        %735 = vmatprep.subr.mxu0 %v659
        %736 = vmatpush1.msra.mxu0 %v658
        %737 = vmatprep.subr.mxu0 %v664
        %738 = vmatpush1.msra.mxu0 %v663
        %739 = vmatprep.subr.mxu0 %v669
        %740 = vmatpush1.msra.mxu0 %v668
        %741 = vmatprep.subr.mxu0 %v674
        %742 = vmatpush1.msra.mxu0 %v673
        %743 = vmatprep.subr.mxu0 %v679
        %744 = vmatpush1.msra.mxu0 %v678
        %745 = vmatprep.subr.mxu0 %v684
        %746 = vmatpush1.msra.mxu0 %v683
        %747 = vmatprep.subr.mxu0 %v689
        %748 = vmatpush1.msra.mxu0 %v688
        %749 = vmatprep.subr.mxu0 %v694
        %750 = vmatpush1.msra.mxu0 %v693
        %751 = vmatprep.subr.mxu0 %v699
        %752 = vmatpush1.msra.mxu0 %v698
        %753 = vmatprep.subr.mxu0 %v704
        %754 = vmatpush1.msra.mxu0 %v703
        %755 = vmatprep.subr.mxu0 %v709
        %756 = vmatpush1.msra.mxu0 %v708
        %757 = vmatprep.subr.mxu0 %v714
        %758 = vmatpush1.msra.mxu0 %v713
        %759 = vmatprep.subr.mxu0 %v719
        %760 = vmatpush1.msra.mxu0 %v718
        %761 = vmatprep.subr.mxu0 %v724
        %762 = vmatpush1.msra.mxu0 %v723
        %763 = vmatprep.subr.mxu0 %v729
        %764 = vmatpush1.msra.mxu0 %v728
        %765 = vmatprep.subr.mxu0 0.0
        %766 = vmatpush1.msra.mxu0 0.0
        %767 = vmatprep.subr.mxu0 0.0
        %768 = vmatpush1.msra.mxu0 0.0
        %769 = vmatprep.subr.mxu0 0.0
        %770 = vmatpush1.msra.mxu0 0.0
        %771 = vmatprep.subr.mxu0 0.0
        %772 = vmatpush1.msra.mxu0 0.0
        %773 = vmatprep.subr.mxu0 0.0
        %774 = vmatpush1.msra.mxu0 0.0
        %775 = vmatprep.subr.mxu0 0.0
        %776 = vmatpush1.msra.mxu0 0.0
        %777 = vmatprep.subr.mxu0 0.0
        %778 = vmatpush1.msra.mxu0 0.0
        %779 = vmatprep.subr.mxu0 0.0
        %780 = vmatpush1.msra.mxu0 0.0
        %781 = vmatprep.subr.mxu0 0.0
        %782 = vmatpush1.msra.mxu0 0.0
        %783 = vmatprep.subr.mxu0 0.0
        %784 = vmatpush1.msra.mxu0 0.0
        %785 = vmatprep.subr.mxu0 0.0
        %786 = vmatpush1.msra.mxu0 0.0
        %787 = vmatprep.subr.mxu0 0.0
        %788 = vmatpush1.msra.mxu0 0.0
        %789 = vmatprep.subr.mxu0 0.0
        %790 = vmatpush1.msra.mxu0 0.0
        %791 = vmatprep.subr.mxu0 0.0
        %792 = vmatpush1.msra.mxu0 0.0
        %793 = vmatprep.subr.mxu0 0.0
        %794 = vmatpush1.msra.mxu0 0.0
        %795 = vmatprep.subr.mxu0 0.0
        %796 = vmatpush1.msra.mxu0 0.0
        %797 = vmatprep.mubr.f32.mxu0 0.0
        %798 = vmatmul.mubr.f32.gmra.mrb[0].mxu0 %v571
        %v799 = vpop.f32.mrb[0].mxu0
        %v800 = vadd.f32 0.0, %v799
        %v801 = vpop.f32.mrb[0].mxu0
        %v802 = vadd.f32 0.0, %v801
        %803 = vdwg.mxu0
        %804 = vmatprep.subr.mxu0 %v656
        %805 = vmatpush1.msra.mxu0 %v655
        %806 = vmatprep.subr.mxu0 %v661
        %807 = vmatpush1.msra.mxu0 %v660
        %808 = vmatprep.subr.mxu0 %v666
        %809 = vmatpush1.msra.mxu0 %v665
        %810 = vmatprep.subr.mxu0 %v671
        %811 = vmatpush1.msra.mxu0 %v670
        %812 = vmatprep.subr.mxu0 %v676
        %813 = vmatpush1.msra.mxu0 %v675
        %814 = vmatprep.subr.mxu0 %v681
        %815 = vmatpush1.msra.mxu0 %v680
        %816 = vmatprep.subr.mxu0 %v686
        %817 = vmatpush1.msra.mxu0 %v685
        %818 = vmatprep.subr.mxu0 %v691
        %819 = vmatpush1.msra.mxu0 %v690
        %820 = vmatprep.subr.mxu0 %v696
        %821 = vmatpush1.msra.mxu0 %v695
        %822 = vmatprep.subr.mxu0 %v701
        %823 = vmatpush1.msra.mxu0 %v700
        %824 = vmatprep.subr.mxu0 %v706
        %825 = vmatpush1.msra.mxu0 %v705
        %826 = vmatprep.subr.mxu0 %v711
        %827 = vmatpush1.msra.mxu0 %v710
        %828 = vmatprep.subr.mxu0 %v716
        %829 = vmatpush1.msra.mxu0 %v715
        %830 = vmatprep.subr.mxu0 %v721
        %831 = vmatpush1.msra.mxu0 %v720
        %832 = vmatprep.subr.mxu0 %v726
        %833 = vmatpush1.msra.mxu0 %v725
        %834 = vmatprep.subr.mxu0 %v731
        %835 = vmatpush1.msra.mxu0 %v730
        %836 = vmatprep.subr.mxu0 0.0
        %837 = vmatpush1.msra.mxu0 0.0
        %838 = vmatprep.subr.mxu0 0.0
        %839 = vmatpush1.msra.mxu0 0.0
        %840 = vmatprep.subr.mxu0 0.0
        %841 = vmatpush1.msra.mxu0 0.0
        %842 = vmatprep.subr.mxu0 0.0
        %843 = vmatpush1.msra.mxu0 0.0
        %844 = vmatprep.subr.mxu0 0.0
        %845 = vmatpush1.msra.mxu0 0.0
        %846 = vmatprep.subr.mxu0 0.0
        %847 = vmatpush1.msra.mxu0 0.0
        %848 = vmatprep.subr.mxu0 0.0
        %849 = vmatpush1.msra.mxu0 0.0
        %850 = vmatprep.subr.mxu0 0.0
        %851 = vmatpush1.msra.mxu0 0.0
        %852 = vmatprep.subr.mxu0 0.0
        %853 = vmatpush1.msra.mxu0 0.0
        %854 = vmatprep.subr.mxu0 0.0
        %855 = vmatpush1.msra.mxu0 0.0
        %856 = vmatprep.subr.mxu0 0.0
        %857 = vmatpush1.msra.mxu0 0.0
        %858 = vmatprep.subr.mxu0 0.0
        %859 = vmatpush1.msra.mxu0 0.0
        %860 = vmatprep.subr.mxu0 0.0
        %861 = vmatpush1.msra.mxu0 0.0
        %862 = vmatprep.subr.mxu0 0.0
        %863 = vmatpush1.msra.mxu0 0.0
        %864 = vmatprep.subr.mxu0 0.0
        %865 = vmatpush1.msra.mxu0 0.0
        %866 = vmatprep.subr.mxu0 0.0
        %867 = vmatpush1.msra.mxu0 0.0
        %868 = vmatprep.mubr.f32.mxu0 0.0
        %869 = vmatmul.mubr.f32.gmra.mrb[0].mxu0 %v571
        %v870 = vpop.f32.mrb[0].mxu0
        %v871 = vadd.f32 0.0, %v870
        %v872 = vpop.f32.mrb[0].mxu0
        %v873 = vadd.f32 0.0, %v872
        %874 = vdwg.mxu0
        %875 = vmatprep.subr.mxu0 0.0
        %876 = vmatpush1.msra.mxu0 %v657
        %877 = vmatprep.subr.mxu0 0.0
        %878 = vmatpush1.msra.mxu0 %v662
        %879 = vmatprep.subr.mxu0 0.0
        %880 = vmatpush1.msra.mxu0 %v667
        %881 = vmatprep.subr.mxu0 0.0
        %882 = vmatpush1.msra.mxu0 %v672
        %883 = vmatprep.subr.mxu0 0.0
        %884 = vmatpush1.msra.mxu0 %v677
        %885 = vmatprep.subr.mxu0 0.0
        %886 = vmatpush1.msra.mxu0 %v682
        %887 = vmatprep.subr.mxu0 0.0
        %888 = vmatpush1.msra.mxu0 %v687
        %889 = vmatprep.subr.mxu0 0.0
        %890 = vmatpush1.msra.mxu0 %v692
        %891 = vmatprep.subr.mxu0 0.0
        %892 = vmatpush1.msra.mxu0 %v697
        %893 = vmatprep.subr.mxu0 0.0
        %894 = vmatpush1.msra.mxu0 %v702
        %895 = vmatprep.subr.mxu0 0.0
        %896 = vmatpush1.msra.mxu0 %v707
        %897 = vmatprep.subr.mxu0 0.0
        %898 = vmatpush1.msra.mxu0 %v712
        %899 = vmatprep.subr.mxu0 0.0
        %900 = vmatpush1.msra.mxu0 %v717
        %901 = vmatprep.subr.mxu0 0.0
        %902 = vmatpush1.msra.mxu0 %v722
        %903 = vmatprep.subr.mxu0 0.0
        %904 = vmatpush1.msra.mxu0 %v727
        %905 = vmatprep.subr.mxu0 0.0
        %906 = vmatpush1.msra.mxu0 %v732
        %907 = vmatprep.subr.mxu0 0.0
        %908 = vmatpush1.msra.mxu0 0.0
        %909 = vmatprep.subr.mxu0 0.0
        %910 = vmatpush1.msra.mxu0 0.0
        %911 = vmatprep.subr.mxu0 0.0
        %912 = vmatpush1.msra.mxu0 0.0
        %913 = vmatprep.subr.mxu0 0.0
        %914 = vmatpush1.msra.mxu0 0.0
        %915 = vmatprep.subr.mxu0 0.0
        %916 = vmatpush1.msra.mxu0 0.0
        %917 = vmatprep.subr.mxu0 0.0
        %918 = vmatpush1.msra.mxu0 0.0
        %919 = vmatprep.subr.mxu0 0.0
        %920 = vmatpush1.msra.mxu0 0.0
        %921 = vmatprep.subr.mxu0 0.0
        %922 = vmatpush1.msra.mxu0 0.0
        %923 = vmatprep.subr.mxu0 0.0
        %924 = vmatpush1.msra.mxu0 0.0
        %925 = vmatprep.subr.mxu0 0.0
        %926 = vmatpush1.msra.mxu0 0.0
        %927 = vmatprep.subr.mxu0 0.0
        %928 = vmatpush1.msra.mxu0 0.0
        %929 = vmatprep.subr.mxu0 0.0
        %930 = vmatpush1.msra.mxu0 0.0
        %931 = vmatprep.subr.mxu0 0.0
        %932 = vmatpush1.msra.mxu0 0.0
        %933 = vmatprep.subr.mxu0 0.0
        %934 = vmatpush1.msra.mxu0 0.0
        %935 = vmatprep.subr.mxu0 0.0
        %936 = vmatpush1.msra.mxu0 0.0
        %937 = vmatprep.subr.mxu0 0.0
        %938 = vmatpush1.msra.mxu0 0.0
        %939 = vmatprep.mubr.f32.mxu0 0.0
        %940 = vmatmul.mubr.f32.gmra.mrb[0].mxu0 %v571
        %v941 = vpop.f32.mrb[0].mxu0
        %v942 = vadd.f32 0.0, %v941
        %v943 = vpop.f32.mrb[0].mxu0
        %944 = vdwg.mxu0
        %945 = vmatprep.subr.mxu0 %v574
        %946 = vmatpush1.msra.mxu0 %v573
        %947 = vmatprep.subr.mxu0 %v579
        %948 = vmatpush1.msra.mxu0 %v578
        %949 = vmatprep.subr.mxu0 %v584
        %950 = vmatpush1.msra.mxu0 %v583
        %951 = vmatprep.subr.mxu0 %v589
        %952 = vmatpush1.msra.mxu0 %v588
        %953 = vmatprep.subr.mxu0 %v594
        %954 = vmatpush1.msra.mxu0 %v593
        %955 = vmatprep.subr.mxu0 %v599
        %956 = vmatpush1.msra.mxu0 %v598
        %957 = vmatprep.subr.mxu0 %v604
        %958 = vmatpush1.msra.mxu0 %v603
        %959 = vmatprep.subr.mxu0 %v609
        %960 = vmatpush1.msra.mxu0 %v608
        %961 = vmatprep.subr.mxu0 %v614
        %962 = vmatpush1.msra.mxu0 %v613
        %963 = vmatprep.subr.mxu0 %v619
        %964 = vmatpush1.msra.mxu0 %v618
        %965 = vmatprep.subr.mxu0 %v624
        %966 = vmatpush1.msra.mxu0 %v623
        %967 = vmatprep.subr.mxu0 %v629
        %968 = vmatpush1.msra.mxu0 %v628
        %969 = vmatprep.subr.mxu0 %v634
        %970 = vmatpush1.msra.mxu0 %v633
        %971 = vmatprep.subr.mxu0 %v639
        %972 = vmatpush1.msra.mxu0 %v638
        %973 = vmatprep.subr.mxu0 %v644
        %974 = vmatpush1.msra.mxu0 %v643
        %975 = vmatprep.subr.mxu0 %v649
        %976 = vmatpush1.msra.mxu0 %v648
        %977 = vmatprep.subr.mxu0 0.0
        %978 = vmatpush1.msra.mxu0 0.0
        %979 = vmatprep.subr.mxu0 0.0
        %980 = vmatpush1.msra.mxu0 0.0
        %981 = vmatprep.subr.mxu0 0.0
        %982 = vmatpush1.msra.mxu0 0.0
        %983 = vmatprep.subr.mxu0 0.0
        %984 = vmatpush1.msra.mxu0 0.0
        %985 = vmatprep.subr.mxu0 0.0
        %986 = vmatpush1.msra.mxu0 0.0
        %987 = vmatprep.subr.mxu0 0.0
        %988 = vmatpush1.msra.mxu0 0.0
        %989 = vmatprep.subr.mxu0 0.0
        %990 = vmatpush1.msra.mxu0 0.0
        %991 = vmatprep.subr.mxu0 0.0
        %992 = vmatpush1.msra.mxu0 0.0
        %993 = vmatprep.subr.mxu0 0.0
        %994 = vmatpush1.msra.mxu0 0.0
        %995 = vmatprep.subr.mxu0 0.0
        %996 = vmatpush1.msra.mxu0 0.0
        %997 = vmatprep.subr.mxu0 0.0
        %998 = vmatpush1.msra.mxu0 0.0
        %999 = vmatprep.subr.mxu0 0.0
        %1000 = vmatpush1.msra.mxu0 0.0
        %1001 = vmatprep.subr.mxu0 0.0
        %1002 = vmatpush1.msra.mxu0 0.0
        %1003 = vmatprep.subr.mxu0 0.0
        %1004 = vmatpush1.msra.mxu0 0.0
        %1005 = vmatprep.subr.mxu0 0.0
        %1006 = vmatpush1.msra.mxu0 0.0
        %1007 = vmatprep.subr.mxu0 0.0
        %1008 = vmatpush1.msra.mxu0 0.0
        %1009 = vmatprep.mubr.f32.mxu0 0.0
        %1010 = vmatmul.mubr.f32.gmra.mrb[0].mxu0 %v570
        %v1011 = vpop.f32.mrb[0].mxu0
        %v1012 = vadd.f32 %v800, %v1011
        %v1013 = vpop.f32.mrb[0].mxu0
        %v1014 = vadd.f32 %v802, %v1013
        %1015 = vdwg.mxu0
        %1016 = vmatprep.subr.mxu0 %v576
        %1017 = vmatpush1.msra.mxu0 %v575
        %1018 = vmatprep.subr.mxu0 %v581
        %1019 = vmatpush1.msra.mxu0 %v580
        %1020 = vmatprep.subr.mxu0 %v586
        %1021 = vmatpush1.msra.mxu0 %v585
        %1022 = vmatprep.subr.mxu0 %v591
        %1023 = vmatpush1.msra.mxu0 %v590
        %1024 = vmatprep.subr.mxu0 %v596
        %1025 = vmatpush1.msra.mxu0 %v595
        %1026 = vmatprep.subr.mxu0 %v601
        %1027 = vmatpush1.msra.mxu0 %v600
        %1028 = vmatprep.subr.mxu0 %v606
        %1029 = vmatpush1.msra.mxu0 %v605
        %1030 = vmatprep.subr.mxu0 %v611
        %1031 = vmatpush1.msra.mxu0 %v610
        %1032 = vmatprep.subr.mxu0 %v616
        %1033 = vmatpush1.msra.mxu0 %v615
        %1034 = vmatprep.subr.mxu0 %v621
        %1035 = vmatpush1.msra.mxu0 %v620
        %1036 = vmatprep.subr.mxu0 %v626
        %1037 = vmatpush1.msra.mxu0 %v625
        %1038 = vmatprep.subr.mxu0 %v631
        %1039 = vmatpush1.msra.mxu0 %v630
        %1040 = vmatprep.subr.mxu0 %v636
        %1041 = vmatpush1.msra.mxu0 %v635
        %1042 = vmatprep.subr.mxu0 %v641
        %1043 = vmatpush1.msra.mxu0 %v640
        %1044 = vmatprep.subr.mxu0 %v646
        %1045 = vmatpush1.msra.mxu0 %v645
        %1046 = vmatprep.subr.mxu0 %v651
        %1047 = vmatpush1.msra.mxu0 %v650
        %1048 = vmatprep.subr.mxu0 0.0
        %1049 = vmatpush1.msra.mxu0 0.0
        %1050 = vmatprep.subr.mxu0 0.0
        %1051 = vmatpush1.msra.mxu0 0.0
        %1052 = vmatprep.subr.mxu0 0.0
        %1053 = vmatpush1.msra.mxu0 0.0
        %1054 = vmatprep.subr.mxu0 0.0
        %1055 = vmatpush1.msra.mxu0 0.0
        %1056 = vmatprep.subr.mxu0 0.0
        %1057 = vmatpush1.msra.mxu0 0.0
        %1058 = vmatprep.subr.mxu0 0.0
        %1059 = vmatpush1.msra.mxu0 0.0
        %1060 = vmatprep.subr.mxu0 0.0
        %1061 = vmatpush1.msra.mxu0 0.0
        %1062 = vmatprep.subr.mxu0 0.0
        %1063 = vmatpush1.msra.mxu0 0.0
        %1064 = vmatprep.subr.mxu0 0.0
        %1065 = vmatpush1.msra.mxu0 0.0
        %1066 = vmatprep.subr.mxu0 0.0
        %1067 = vmatpush1.msra.mxu0 0.0
        %1068 = vmatprep.subr.mxu0 0.0
        %1069 = vmatpush1.msra.mxu0 0.0
        %1070 = vmatprep.subr.mxu0 0.0
        %1071 = vmatpush1.msra.mxu0 0.0
        %1072 = vmatprep.subr.mxu0 0.0
        %1073 = vmatpush1.msra.mxu0 0.0
        %1074 = vmatprep.subr.mxu0 0.0
        %1075 = vmatpush1.msra.mxu0 0.0
        %1076 = vmatprep.subr.mxu0 0.0
        %1077 = vmatpush1.msra.mxu0 0.0
        %1078 = vmatprep.subr.mxu0 0.0
        %1079 = vmatpush1.msra.mxu0 0.0
        %1080 = vmatprep.mubr.f32.mxu0 0.0
        %1081 = vmatmul.mubr.f32.gmra.mrb[0].mxu0 %v570
        %v1082 = vpop.f32.mrb[0].mxu0
        %v1083 = vadd.f32 %v871, %v1082
        %v1084 = vpop.f32.mrb[0].mxu0
        %v1085 = vadd.f32 %v873, %v1084
        %1086 = vdwg.mxu0
        %1087 = vmatprep.subr.mxu0 0.0
        %1088 = vmatpush1.msra.mxu0 %v577
        %1089 = vmatprep.subr.mxu0 0.0
        %1090 = vmatpush1.msra.mxu0 %v582
        %1091 = vmatprep.subr.mxu0 0.0
        %1092 = vmatpush1.msra.mxu0 %v587
        %1093 = vmatprep.subr.mxu0 0.0
        %1094 = vmatpush1.msra.mxu0 %v592
        %1095 = vmatprep.subr.mxu0 0.0
        %1096 = vmatpush1.msra.mxu0 %v597
        %1097 = vmatprep.subr.mxu0 0.0
        %1098 = vmatpush1.msra.mxu0 %v602
        %1099 = vmatprep.subr.mxu0 0.0
        %1100 = vmatpush1.msra.mxu0 %v607
        %1101 = vmatprep.subr.mxu0 0.0
        %1102 = vmatpush1.msra.mxu0 %v612
        %1103 = vmatprep.subr.mxu0 0.0
        %1104 = vmatpush1.msra.mxu0 %v617
        %1105 = vmatprep.subr.mxu0 0.0
        %1106 = vmatpush1.msra.mxu0 %v622
        %1107 = vmatprep.subr.mxu0 0.0
        %1108 = vmatpush1.msra.mxu0 %v627
        %1109 = vmatprep.subr.mxu0 0.0
        %1110 = vmatpush1.msra.mxu0 %v632
        %1111 = vmatprep.subr.mxu0 0.0
        %1112 = vmatpush1.msra.mxu0 %v637
        %1113 = vmatprep.subr.mxu0 0.0
        %1114 = vmatpush1.msra.mxu0 %v642
        %1115 = vmatprep.subr.mxu0 0.0
        %1116 = vmatpush1.msra.mxu0 %v647
        %1117 = vmatprep.subr.mxu0 0.0
        %1118 = vmatpush1.msra.mxu0 %v652
        %1119 = vmatprep.subr.mxu0 0.0
        %1120 = vmatpush1.msra.mxu0 0.0
        %1121 = vmatprep.subr.mxu0 0.0
        %1122 = vmatpush1.msra.mxu0 0.0
        %1123 = vmatprep.subr.mxu0 0.0
        %1124 = vmatpush1.msra.mxu0 0.0
        %1125 = vmatprep.subr.mxu0 0.0
        %1126 = vmatpush1.msra.mxu0 0.0
        %1127 = vmatprep.subr.mxu0 0.0
        %1128 = vmatpush1.msra.mxu0 0.0
        %1129 = vmatprep.subr.mxu0 0.0
        %1130 = vmatpush1.msra.mxu0 0.0
        %1131 = vmatprep.subr.mxu0 0.0
        %1132 = vmatpush1.msra.mxu0 0.0
        %1133 = vmatprep.subr.mxu0 0.0
        %1134 = vmatpush1.msra.mxu0 0.0
        %1135 = vmatprep.subr.mxu0 0.0
        %1136 = vmatpush1.msra.mxu0 0.0
        %1137 = vmatprep.subr.mxu0 0.0
        %1138 = vmatpush1.msra.mxu0 0.0
        %1139 = vmatprep.subr.mxu0 0.0
        %1140 = vmatpush1.msra.mxu0 0.0
        %1141 = vmatprep.subr.mxu0 0.0
        %1142 = vmatpush1.msra.mxu0 0.0
        %1143 = vmatprep.subr.mxu0 0.0
        %1144 = vmatpush1.msra.mxu0 0.0
        %1145 = vmatprep.subr.mxu0 0.0
        %1146 = vmatpush1.msra.mxu0 0.0
        %1147 = vmatprep.subr.mxu0 0.0
        %1148 = vmatpush1.msra.mxu0 0.0
        %1149 = vmatprep.subr.mxu0 0.0
        %1150 = vmatpush1.msra.mxu0 0.0
        %1151 = vmatprep.mubr.f32.mxu0 0.0
        %1152 = vmatmul.mubr.f32.gmra.mrb[0].mxu0 %v570
        %v1153 = vpop.f32.mrb[0].mxu0
        %v1154 = vadd.f32 %v942, %v1153
        %v1155 = vpop.f32.mrb[0].mxu0
        %1156 = vdwg.mxu0
        %v1157 = vld [vmem:[#allocation19] sm:$0xff]
        %v1158 = vld [vmem:[#allocation19 + $0x8] sm:$0xff]
        %v1159 = vld [vmem:[#allocation19 + $0x10] sm:$0xff]
        %v1160 = vld [vmem:[#allocation19 + $0x18] sm:$0xff]
        %v1161 = vld [vmem:[#allocation19 + $0x20] sm:$0xff]
        %v1162 = vld [vmem:[#allocation19 + $0x28] sm:$0xff]
        %v1163 = vld [vmem:[#allocation19 + $0x30] sm:$0xff]
        %v1164 = vld [vmem:[#allocation19 + $0x38] sm:$0xff]
        %v1165 = vld [vmem:[#allocation19 + $0x40] sm:$0xff]
        %v1166 = vld [vmem:[#allocation19 + $0x48] sm:$0xff]
        %v1167 = vld [vmem:[#allocation19 + $0x50] sm:$0xff]
        %v1168 = vld [vmem:[#allocation19 + $0x58] sm:$0xff]
        %v1169 = vld [vmem:[#allocation19 + $0x60] sm:$0xff]
        %v1170 = vld [vmem:[#allocation19 + $0x68] sm:$0xff]
        %v1171 = vld [vmem:[#allocation19 + $0x70] sm:$0xff]
        %v1172 = vld [vmem:[#allocation19 + $0x78] sm:$0xff]
        %v1173 = vld [vmem:[#allocation19 + $0x80] sm:$0xff]
        %v1174 = vld [vmem:[#allocation19 + $0x88] sm:$0xff]
        %v1175 = vld [vmem:[#allocation19 + $0x90] sm:$0xff]
        %v1176 = vld [vmem:[#allocation19 + $0x98] sm:$0xff]
        %v1177 = vld [vmem:[#allocation19 + $0xa0] sm:$0xff]
        %v1178 = vld [vmem:[#allocation19 + $0xa8] sm:$0xff]
        %v1179 = vld [vmem:[#allocation19 + $0xb0] sm:$0xff]
        %v1180 = vld [vmem:[#allocation19 + $0xb8] sm:$0xff]
        %v1181 = vld [vmem:[#allocation19 + $0xc0] sm:$0xff]
        %v1182 = vld [vmem:[#allocation19 + $0xc8] sm:$0xff]
        %v1183 = vld [vmem:[#allocation19 + $0xd0] sm:$0xff]
        %v1184 = vld [vmem:[#allocation19 + $0xd8] sm:$0xff]
        %v1185 = vld [vmem:[#allocation19 + $0xe0] sm:$0xff]
        %v1186 = vld [vmem:[#allocation19 + $0xe8] sm:$0xff]
        %v1187 = vld [vmem:[#allocation19 + $0xf0] sm:$0xff]
        %v1188 = vld [vmem:[#allocation19 + $0xf8] sm:$0xff]
        %v1189 = vld [vmem:[#allocation19 + $0x100] sm:$0xff]
        %v1190 = vld [vmem:[#allocation19 + $0x108] sm:$0xff]
        %v1191 = vld [vmem:[#allocation19 + $0x110] sm:$0xff]
        %v1192 = vld [vmem:[#allocation19 + $0x118] sm:$0xff]
        %v1193 = vld [vmem:[#allocation19 + $0x120] sm:$0xff]
        %v1194 = vld [vmem:[#allocation19 + $0x128] sm:$0xff]
        %v1195 = vld [vmem:[#allocation19 + $0x130] sm:$0xff]
        %v1196 = vld [vmem:[#allocation19 + $0x138] sm:$0xff]
        %v1197 = vld [vmem:[#allocation19 + $0x140] sm:$0xff]
        %v1198 = vld [vmem:[#allocation19 + $0x148] sm:$0xff]
        %v1199 = vld [vmem:[#allocation19 + $0x150] sm:$0xff]
        %v1200 = vld [vmem:[#allocation19 + $0x158] sm:$0xff]
        %v1201 = vld [vmem:[#allocation19 + $0x160] sm:$0xff]
        %v1202 = vld [vmem:[#allocation19 + $0x168] sm:$0xff]
        %v1203 = vld [vmem:[#allocation19 + $0x170] sm:$0xff]
        %v1204 = vld [vmem:[#allocation19 + $0x178] sm:$0xff]
        %v1205 = vld [vmem:[#allocation19 + $0x180] sm:$0xff]
        %v1206 = vld [vmem:[#allocation19 + $0x188] sm:$0xff]
        %v1207 = vld [vmem:[#allocation19 + $0x190] sm:$0xff]
        %v1208 = vld [vmem:[#allocation19 + $0x198] sm:$0xff]
        %v1209 = vld [vmem:[#allocation19 + $0x1a0] sm:$0xff]
        %v1210 = vld [vmem:[#allocation19 + $0x1a8] sm:$0xff]
        %v1211 = vld [vmem:[#allocation19 + $0x1b0] sm:$0xff]
        %v1212 = vld [vmem:[#allocation19 + $0x1b8] sm:$0xff]
        %v1213 = vld [vmem:[#allocation19 + $0x1c0] sm:$0xff]
        %v1214 = vld [vmem:[#allocation19 + $0x1c8] sm:$0xff]
        %v1215 = vld [vmem:[#allocation19 + $0x1d0] sm:$0xff]
        %v1216 = vld [vmem:[#allocation19 + $0x1d8] sm:$0xff]
        %v1217 = vld [vmem:[#allocation19 + $0x1e0] sm:$0xff]
        %v1218 = vld [vmem:[#allocation19 + $0x1e8] sm:$0xff]
        %v1219 = vld [vmem:[#allocation19 + $0x1f0] sm:$0xff]
        %v1220 = vld [vmem:[#allocation19 + $0x1f8] sm:$0xff]
        %v1221 = vld [vmem:[#allocation19 + $0x200] sm:$0xff]
        %v1222 = vld [vmem:[#allocation19 + $0x208] sm:$0xff]
        %v1223 = vld [vmem:[#allocation19 + $0x210] sm:$0xff]
        %v1224 = vld [vmem:[#allocation19 + $0x218] sm:$0xff]
        %v1225 = vld [vmem:[#allocation19 + $0x220] sm:$0xff]
        %v1226 = vld [vmem:[#allocation19 + $0x228] sm:$0xff]
        %v1227 = vld [vmem:[#allocation19 + $0x230] sm:$0xff]
        %v1228 = vld [vmem:[#allocation19 + $0x238] sm:$0xff]
        %v1229 = vld [vmem:[#allocation19 + $0x240] sm:$0xff]
        %v1230 = vld [vmem:[#allocation19 + $0x248] sm:$0xff]
        %v1231 = vld [vmem:[#allocation19 + $0x250] sm:$0xff]
        %v1232 = vld [vmem:[#allocation19 + $0x258] sm:$0xff]
        %v1233 = vld [vmem:[#allocation19 + $0x260] sm:$0xff]
        %v1234 = vld [vmem:[#allocation19 + $0x268] sm:$0xff]
        %v1235 = vld [vmem:[#allocation19 + $0x270] sm:$0xff]
        %v1236 = vld [vmem:[#allocation19 + $0x278] sm:$0xff]
        %1237 = vmatprep.subr.mxu0 %v1158
        %1238 = vmatpush1.msra.mxu0 %v1157
        %1239 = vmatprep.subr.mxu0 %v1163
        %1240 = vmatpush1.msra.mxu0 %v1162
        %1241 = vmatprep.subr.mxu0 %v1168
        %1242 = vmatpush1.msra.mxu0 %v1167
        %1243 = vmatprep.subr.mxu0 %v1173
        %1244 = vmatpush1.msra.mxu0 %v1172
        %1245 = vmatprep.subr.mxu0 %v1178
        %1246 = vmatpush1.msra.mxu0 %v1177
        %1247 = vmatprep.subr.mxu0 %v1183
        %1248 = vmatpush1.msra.mxu0 %v1182
        %1249 = vmatprep.subr.mxu0 %v1188
        %1250 = vmatpush1.msra.mxu0 %v1187
        %1251 = vmatprep.subr.mxu0 %v1193
        %1252 = vmatpush1.msra.mxu0 %v1192
        %1253 = vmatprep.subr.mxu0 %v1198
        %1254 = vmatpush1.msra.mxu0 %v1197
        %1255 = vmatprep.subr.mxu0 %v1203
        %1256 = vmatpush1.msra.mxu0 %v1202
        %1257 = vmatprep.subr.mxu0 %v1208
        %1258 = vmatpush1.msra.mxu0 %v1207
        %1259 = vmatprep.subr.mxu0 %v1213
        %1260 = vmatpush1.msra.mxu0 %v1212
        %1261 = vmatprep.subr.mxu0 %v1218
        %1262 = vmatpush1.msra.mxu0 %v1217
        %1263 = vmatprep.subr.mxu0 %v1223
        %1264 = vmatpush1.msra.mxu0 %v1222
        %1265 = vmatprep.subr.mxu0 %v1228
        %1266 = vmatpush1.msra.mxu0 %v1227
        %1267 = vmatprep.subr.mxu0 %v1233
        %1268 = vmatpush1.msra.mxu0 %v1232
        %1269 = vmatprep.subr.mxu0 0.0
        %1270 = vmatpush1.msra.mxu0 0.0
        %1271 = vmatprep.subr.mxu0 0.0
        %1272 = vmatpush1.msra.mxu0 0.0
        %1273 = vmatprep.subr.mxu0 0.0
        %1274 = vmatpush1.msra.mxu0 0.0
        %1275 = vmatprep.subr.mxu0 0.0
        %1276 = vmatpush1.msra.mxu0 0.0
        %1277 = vmatprep.subr.mxu0 0.0
        %1278 = vmatpush1.msra.mxu0 0.0
        %1279 = vmatprep.subr.mxu0 0.0
        %1280 = vmatpush1.msra.mxu0 0.0
        %1281 = vmatprep.subr.mxu0 0.0
        %1282 = vmatpush1.msra.mxu0 0.0
        %1283 = vmatprep.subr.mxu0 0.0
        %1284 = vmatpush1.msra.mxu0 0.0
        %1285 = vmatprep.subr.mxu0 0.0
        %1286 = vmatpush1.msra.mxu0 0.0
        %1287 = vmatprep.subr.mxu0 0.0
        %1288 = vmatpush1.msra.mxu0 0.0
        %1289 = vmatprep.subr.mxu0 0.0
        %1290 = vmatpush1.msra.mxu0 0.0
        %1291 = vmatprep.subr.mxu0 0.0
        %1292 = vmatpush1.msra.mxu0 0.0
        %1293 = vmatprep.subr.mxu0 0.0
        %1294 = vmatpush1.msra.mxu0 0.0
        %1295 = vmatprep.subr.mxu0 0.0
        %1296 = vmatpush1.msra.mxu0 0.0
        %1297 = vmatprep.subr.mxu0 0.0
        %1298 = vmatpush1.msra.mxu0 0.0
        %1299 = vmatprep.subr.mxu0 0.0
        %1300 = vmatpush1.msra.mxu0 0.0
        %1301 = vmatprep.mubr.f32.mxu0 0.0
        %1302 = vmatmul.mubr.f32.gmra.mrb[0].mxu0 %v572
        %v1303 = vpop.f32.mrb[0].mxu0
        %v1304 = vadd.f32 0.0, %v1303
        %v1305 = vpop.f32.mrb[0].mxu0
        %v1306 = vadd.f32 0.0, %v1305
        %1307 = vdwg.mxu0
        %1308 = vmatprep.subr.mxu0 %v1160
        %1309 = vmatpush1.msra.mxu0 %v1159
        %1310 = vmatprep.subr.mxu0 %v1165
        %1311 = vmatpush1.msra.mxu0 %v1164
        %1312 = vmatprep.subr.mxu0 %v1170
        %1313 = vmatpush1.msra.mxu0 %v1169
        %1314 = vmatprep.subr.mxu0 %v1175
        %1315 = vmatpush1.msra.mxu0 %v1174
        %1316 = vmatprep.subr.mxu0 %v1180
        %1317 = vmatpush1.msra.mxu0 %v1179
        %1318 = vmatprep.subr.mxu0 %v1185
        %1319 = vmatpush1.msra.mxu0 %v1184
        %1320 = vmatprep.subr.mxu0 %v1190
        %1321 = vmatpush1.msra.mxu0 %v1189
        %1322 = vmatprep.subr.mxu0 %v1195
        %1323 = vmatpush1.msra.mxu0 %v1194
        %1324 = vmatprep.subr.mxu0 %v1200
        %1325 = vmatpush1.msra.mxu0 %v1199
        %1326 = vmatprep.subr.mxu0 %v1205
        %1327 = vmatpush1.msra.mxu0 %v1204
        %1328 = vmatprep.subr.mxu0 %v1210
        %1329 = vmatpush1.msra.mxu0 %v1209
        %1330 = vmatprep.subr.mxu0 %v1215
        %1331 = vmatpush1.msra.mxu0 %v1214
        %1332 = vmatprep.subr.mxu0 %v1220
        %1333 = vmatpush1.msra.mxu0 %v1219
        %1334 = vmatprep.subr.mxu0 %v1225
        %1335 = vmatpush1.msra.mxu0 %v1224
        %1336 = vmatprep.subr.mxu0 %v1230
        %1337 = vmatpush1.msra.mxu0 %v1229
        %1338 = vmatprep.subr.mxu0 %v1235
        %1339 = vmatpush1.msra.mxu0 %v1234
        %1340 = vmatprep.subr.mxu0 0.0
        %1341 = vmatpush1.msra.mxu0 0.0
        %1342 = vmatprep.subr.mxu0 0.0
        %1343 = vmatpush1.msra.mxu0 0.0
        %1344 = vmatprep.subr.mxu0 0.0
        %1345 = vmatpush1.msra.mxu0 0.0
        %1346 = vmatprep.subr.mxu0 0.0
        %1347 = vmatpush1.msra.mxu0 0.0
        %1348 = vmatprep.subr.mxu0 0.0
        %1349 = vmatpush1.msra.mxu0 0.0
        %1350 = vmatprep.subr.mxu0 0.0
        %1351 = vmatpush1.msra.mxu0 0.0
        %1352 = vmatprep.subr.mxu0 0.0
        %1353 = vmatpush1.msra.mxu0 0.0
        %1354 = vmatprep.subr.mxu0 0.0
        %1355 = vmatpush1.msra.mxu0 0.0
        %1356 = vmatprep.subr.mxu0 0.0
        %1357 = vmatpush1.msra.mxu0 0.0
        %1358 = vmatprep.subr.mxu0 0.0
        %1359 = vmatpush1.msra.mxu0 0.0
        %1360 = vmatprep.subr.mxu0 0.0
        %1361 = vmatpush1.msra.mxu0 0.0
        %1362 = vmatprep.subr.mxu0 0.0
        %1363 = vmatpush1.msra.mxu0 0.0
        %1364 = vmatprep.subr.mxu0 0.0
        %1365 = vmatpush1.msra.mxu0 0.0
        %1366 = vmatprep.subr.mxu0 0.0
        %1367 = vmatpush1.msra.mxu0 0.0
        %1368 = vmatprep.subr.mxu0 0.0
        %1369 = vmatpush1.msra.mxu0 0.0
        %1370 = vmatprep.subr.mxu0 0.0
        %1371 = vmatpush1.msra.mxu0 0.0
        %1372 = vmatprep.mubr.f32.mxu0 0.0
        %1373 = vmatmul.mubr.f32.gmra.mrb[0].mxu0 %v572
        %v1374 = vpop.f32.mrb[0].mxu0
        %v1375 = vadd.f32 0.0, %v1374
        %v1376 = vpop.f32.mrb[0].mxu0
        %v1377 = vadd.f32 0.0, %v1376
        %1378 = vdwg.mxu0
        %1379 = vmatprep.subr.mxu0 0.0
        %1380 = vmatpush1.msra.mxu0 %v1161
        %1381 = vmatprep.subr.mxu0 0.0
        %1382 = vmatpush1.msra.mxu0 %v1166
        %1383 = vmatprep.subr.mxu0 0.0
        %1384 = vmatpush1.msra.mxu0 %v1171
        %1385 = vmatprep.subr.mxu0 0.0
        %1386 = vmatpush1.msra.mxu0 %v1176
        %1387 = vmatprep.subr.mxu0 0.0
        %1388 = vmatpush1.msra.mxu0 %v1181
        %1389 = vmatprep.subr.mxu0 0.0
        %1390 = vmatpush1.msra.mxu0 %v1186
        %1391 = vmatprep.subr.mxu0 0.0
        %1392 = vmatpush1.msra.mxu0 %v1191
        %1393 = vmatprep.subr.mxu0 0.0
        %1394 = vmatpush1.msra.mxu0 %v1196
        %1395 = vmatprep.subr.mxu0 0.0
        %1396 = vmatpush1.msra.mxu0 %v1201
        %1397 = vmatprep.subr.mxu0 0.0
        %1398 = vmatpush1.msra.mxu0 %v1206
        %1399 = vmatprep.subr.mxu0 0.0
        %1400 = vmatpush1.msra.mxu0 %v1211
        %1401 = vmatprep.subr.mxu0 0.0
        %1402 = vmatpush1.msra.mxu0 %v1216
        %1403 = vmatprep.subr.mxu0 0.0
        %1404 = vmatpush1.msra.mxu0 %v1221
        %1405 = vmatprep.subr.mxu0 0.0
        %1406 = vmatpush1.msra.mxu0 %v1226
        %1407 = vmatprep.subr.mxu0 0.0
        %1408 = vmatpush1.msra.mxu0 %v1231
        %1409 = vmatprep.subr.mxu0 0.0
        %1410 = vmatpush1.msra.mxu0 %v1236
        %1411 = vmatprep.subr.mxu0 0.0
        %1412 = vmatpush1.msra.mxu0 0.0
        %1413 = vmatprep.subr.mxu0 0.0
        %1414 = vmatpush1.msra.mxu0 0.0
        %1415 = vmatprep.subr.mxu0 0.0
        %1416 = vmatpush1.msra.mxu0 0.0
        %1417 = vmatprep.subr.mxu0 0.0
        %1418 = vmatpush1.msra.mxu0 0.0
        %1419 = vmatprep.subr.mxu0 0.0
        %1420 = vmatpush1.msra.mxu0 0.0
        %1421 = vmatprep.subr.mxu0 0.0
        %1422 = vmatpush1.msra.mxu0 0.0
        %1423 = vmatprep.subr.mxu0 0.0
        %1424 = vmatpush1.msra.mxu0 0.0
        %1425 = vmatprep.subr.mxu0 0.0
        %1426 = vmatpush1.msra.mxu0 0.0
        %1427 = vmatprep.subr.mxu0 0.0
        %1428 = vmatpush1.msra.mxu0 0.0
        %1429 = vmatprep.subr.mxu0 0.0
        %1430 = vmatpush1.msra.mxu0 0.0
        %1431 = vmatprep.subr.mxu0 0.0
        %1432 = vmatpush1.msra.mxu0 0.0
        %1433 = vmatprep.subr.mxu0 0.0
        %1434 = vmatpush1.msra.mxu0 0.0
        %1435 = vmatprep.subr.mxu0 0.0
        %1436 = vmatpush1.msra.mxu0 0.0
        %1437 = vmatprep.subr.mxu0 0.0
        %1438 = vmatpush1.msra.mxu0 0.0
        %1439 = vmatprep.subr.mxu0 0.0
        %1440 = vmatpush1.msra.mxu0 0.0
        %1441 = vmatprep.subr.mxu0 0.0
        %1442 = vmatpush1.msra.mxu0 0.0
        %1443 = vmatprep.mubr.f32.mxu0 0.0
        %1444 = vmatmul.mubr.f32.gmra.mrb[0].mxu0 %v572
        %v1445 = vpop.f32.mrb[0].mxu0
        %v1446 = vadd.f32 0.0, %v1445
        %v1447 = vpop.f32.mrb[0].mxu0
        %1448 = vdwg.mxu0
        %v1449 = vadd.f32 %v1012, %v1304
        %v1450 = vadd.f32 %v1014, %v1306
        %v1451 = vadd.f32 %v1083, %v1375
        %v1452 = vadd.f32 %v1085, %v1377
        %v1453 = vadd.f32 %v1154, %v1446
        %v1454 = vld [vmem:[%s7] sm:$0x1f]
        %v1456 = vlaneseq
        %v1457 = vshrl.u32 %v1456, 7
        %v1458 = vsub.s32 0, %v1457
        %v1459 = vrot.slane %v1454, %v1458
        %v1460 = vlaneseq
        %v1461 = vshrl.u32 %v1460, 7
        %v1462 = vsub.s32 1, %v1461
        %v1463 = vrot.slane %v1454, %v1462
        %v1464 = vlaneseq
        %v1465 = vshrl.u32 %v1464, 7
        %v1466 = vsub.s32 2, %v1465
        %v1467 = vrot.slane %v1454, %v1466
        %v1468 = vlaneseq
        %v1469 = vshrl.u32 %v1468, 7
        %v1470 = vsub.s32 3, %v1469
        %v1471 = vrot.slane %v1454, %v1470
        %v1472 = vlaneseq
        %v1473 = vshrl.u32 %v1472, 7
        %v1474 = vsub.s32 4, %v1473
        %v1475 = vrot.slane %v1454, %v1474
        %v1481 = vadd.f32 %v1449, %v1459
        %v1482 = vadd.f32 %v1450, %v1463
        %v1483 = vadd.f32 %v1451, %v1467
        %v1484 = vadd.f32 %v1452, %v1471
        %v1485 = vadd.f32 %v1453, %v1475
        %v1486 = vxor.u32 %v1481, 2147483648
        %v1487 = vxor.u32 %v1482, 2147483648
        %v1488 = vxor.u32 %v1483, 2147483648
        %v1489 = vxor.u32 %v1484, 2147483648
        %v1490 = vxor.u32 %v1485, 2147483648
        %v1491 = vmul.f32 %v1486, 1.442695
        %v1492 = vpow.pop %v1491
        %v1493 = vmul.f32 %v1487, 1.442695
        %v1494 = vpow.pop %v1493
        %v1495 = vmul.f32 %v1488, 1.442695
        %v1496 = vpow.pop %v1495
        %v1497 = vmul.f32 %v1489, 1.442695
        %v1498 = vpow.pop %v1497
        %v1499 = vmul.f32 %v1490, 1.442695
        %v1500 = vpow.pop %v1499
        %v1501 = vadd.f32 %v1492, 1.0
        %v1502 = vadd.f32 %v1494, 1.0
        %v1503 = vadd.f32 %v1496, 1.0
        %v1504 = vadd.f32 %v1498, 1.0
        %v1505 = vadd.f32 %v1500, 1.0
        %v1506 = vrcp.pop %v1501
        %v1507 = vmul.f32 1.0, %v1506
        %v1508 = vrcp.pop %v1502
        %v1509 = vmul.f32 1.0, %v1508
        %v1510 = vrcp.pop %v1503
        %v1511 = vmul.f32 1.0, %v1510
        %v1512 = vrcp.pop %v1504
        %v1513 = vmul.f32 1.0, %v1512
        %v1514 = vrcp.pop %v1505
        %v1515 = vmul.f32 1.0, %v1514
        %v1516 = vtanh.pop %v1511
        %v1517 = vmul.f32 %v1507, %v1516
        %v1518 = vld [vmem:[#allocation7] sm:$0xff]
        %v1519 = vmul.f32 %v1513, %v1518
        %v1520 = vadd.f32 %v1517, %v1519
        %v1521 = vld [vmem:[#allocation8] sm:$0xff]
        %v1522 = vmul.f32 %v1515, %v1521
        %v1523 = vadd.f32 %v1520, %v1522
        %v1524 = vtanh.pop %v1523
        %v1525 = vmul.f32 %v1509, %v1524
        %s1526 = sadd.s32 %s46, 1
        %s1527 = smul.u32 %s1526, 8
        %s1528 = scalar_lea.vmem [#allocation2], %s1527
        %1529 = vst [vmem:[%s1528] sm:$0xff] %v1525
        %s1530 = scalar_lea.vmem [#allocation3], %s1527
        %1531 = vst [vmem:[%s1530] sm:$0xff] %v1523
        %p1532 = scmp.eq.s32.totalorder %s46, 3
        // Predicated region
        $region73: #{tpu_custom_call.1} parent=55 // pred_check
          %p1533 = pneg %p1532
        $region74: #{tpu_custom_call.1} parent=55 // pred_check_branch
          %1535 = sbr.rel (%p1533) target = $region76
        $region75: #{tpu_custom_call.1} parent=55 // pred_region
          %v1536 = vld [vmem:[%s8] sm:$0xff]
          %v1537 = vld [vmem:[%s8 + $0x8] sm:$0xff]
          %v1538 = vld [vmem:[%s8 + $0x10] sm:$0xff]
          %v1539 = vld [vmem:[%s8 + $0x18] sm:$0xff]
          %v1540 = vld [vmem:[%s8 + $0x20] sm:$0xff]
          %v1541 = vld [vmem:[%s8 + $0x28] sm:$0xff]
          %v1542 = vld [vmem:[%s8 + $0x30] sm:$0xff]
          %v1543 = vld [vmem:[%s8 + $0x38] sm:$0xff]
          %v1544 = vld [vmem:[%s8 + $0x40] sm:$0xff]
          %v1545 = vld [vmem:[%s8 + $0x48] sm:$0xff]
          %v1546 = vld [vmem:[%s8 + $0x50] sm:$0xff]
          %v1547 = vld [vmem:[%s8 + $0x58] sm:$0xff]
          %v1548 = vld [vmem:[%s8 + $0x60] sm:$0xff]
          %v1549 = vld [vmem:[%s8 + $0x68] sm:$0xff]
          %v1550 = vld [vmem:[%s8 + $0x70] sm:$0xff]
          %v1551 = vld [vmem:[%s8 + $0x78] sm:$0xff]
          %v1552 = vld [vmem:[%s9] sm:$0x1]
          %1553 = vmatprep.subr.mxu0 0.0
          %1554 = vmatpush1.msra.mxu0 %v1536
          %1555 = vmatprep.subr.mxu0 0.0
          %1556 = vmatpush1.msra.mxu0 %v1537
          %1557 = vmatprep.subr.mxu0 0.0
          %1558 = vmatpush1.msra.mxu0 %v1538
          %1559 = vmatprep.subr.mxu0 0.0
          %1560 = vmatpush1.msra.mxu0 %v1539
          %1561 = vmatprep.subr.mxu0 0.0
          %1562 = vmatpush1.msra.mxu0 %v1540
          %1563 = vmatprep.subr.mxu0 0.0
          %1564 = vmatpush1.msra.mxu0 %v1541
          %1565 = vmatprep.subr.mxu0 0.0
          %1566 = vmatpush1.msra.mxu0 %v1542
          %1567 = vmatprep.subr.mxu0 0.0
          %1568 = vmatpush1.msra.mxu0 %v1543
          %1569 = vmatprep.subr.mxu0 0.0
          %1570 = vmatpush1.msra.mxu0 %v1544
          %1571 = vmatprep.subr.mxu0 0.0
          %1572 = vmatpush1.msra.mxu0 %v1545
          %1573 = vmatprep.subr.mxu0 0.0
          %1574 = vmatpush1.msra.mxu0 %v1546
          %1575 = vmatprep.subr.mxu0 0.0
          %1576 = vmatpush1.msra.mxu0 %v1547
          %1577 = vmatprep.subr.mxu0 0.0
          %1578 = vmatpush1.msra.mxu0 %v1548
          %1579 = vmatprep.subr.mxu0 0.0
          %1580 = vmatpush1.msra.mxu0 %v1549
          %1581 = vmatprep.subr.mxu0 0.0
          %1582 = vmatpush1.msra.mxu0 %v1550
          %1583 = vmatprep.subr.mxu0 0.0
          %1584 = vmatpush1.msra.mxu0 %v1551
          %1585 = vmatprep.subr.mxu0 0.0
          %1586 = vmatpush1.msra.mxu0 0.0
          %1587 = vmatprep.subr.mxu0 0.0
          %1588 = vmatpush1.msra.mxu0 0.0
          %1589 = vmatprep.subr.mxu0 0.0
          %1590 = vmatpush1.msra.mxu0 0.0
          %1591 = vmatprep.subr.mxu0 0.0
          %1592 = vmatpush1.msra.mxu0 0.0
          %1593 = vmatprep.subr.mxu0 0.0
          %1594 = vmatpush1.msra.mxu0 0.0
          %1595 = vmatprep.subr.mxu0 0.0
          %1596 = vmatpush1.msra.mxu0 0.0
          %1597 = vmatprep.subr.mxu0 0.0
          %1598 = vmatpush1.msra.mxu0 0.0
          %1599 = vmatprep.subr.mxu0 0.0
          %1600 = vmatpush1.msra.mxu0 0.0
          %1601 = vmatprep.subr.mxu0 0.0
          %1602 = vmatpush1.msra.mxu0 0.0
          %1603 = vmatprep.subr.mxu0 0.0
          %1604 = vmatpush1.msra.mxu0 0.0
          %1605 = vmatprep.subr.mxu0 0.0
          %1606 = vmatpush1.msra.mxu0 0.0
          %1607 = vmatprep.subr.mxu0 0.0
          %1608 = vmatpush1.msra.mxu0 0.0
          %1609 = vmatprep.subr.mxu0 0.0
          %1610 = vmatpush1.msra.mxu0 0.0
          %1611 = vmatprep.subr.mxu0 0.0
          %1612 = vmatpush1.msra.mxu0 0.0
          %1613 = vmatprep.subr.mxu0 0.0
          %1614 = vmatpush1.msra.mxu0 0.0
          %1615 = vmatprep.subr.mxu0 0.0
          %1616 = vmatpush1.msra.mxu0 0.0
          %1617 = vmatprep.mubr.f32.mxu0 0.0
          %1618 = vmatmul.mubr.f32.gmra.mrb[0].mxu0 %v1525
          %v1619 = vpop.f32.mrb[0].mxu0
          %v1620 = vadd.f32 %v1552, %v1619
          %v1621 = vpop.f32.mrb[0].mxu0
          %1622 = vdwg.mxu0
          %v1623 = vmax.f32 %v1620, 0.0
          %v1624 = vld [vmem:[%s10] sm:$0x1]
          %v1625 = vmul.f32 %v1623, %v1624
          %vm1626 = vcmask 516096
          %v1627 = vsel %vm1626, %v1625, 0.0
          %1628 = vadd.xlane.f32.xlu0 %v1627
          %v1629 = vpop.xlane.xlu0 %1628
          %v1630 = vld [vmem:[#allocation13] sm:$0x1]
          %v1631 = vadd.f32 %v1629, %v1630
          %vm1632 = vcmask 0
          %1633 = vst.msk [vmem:[#allocation20] sm:$0x1] %vm1632, %v1631
          %1634 = vst [vmem:[#allocation21] sm:$0x1] %v1525
          %1635 = vst [vmem:[#allocation23] sm:$0x1] %v1523
        $region76: #{tpu_custom_call.1} parent=55 // pred_fallthru
          _
        // Predicated region
        $region77: #{tpu_custom_call.1} parent=55 // pred_check
          %p1636 = pneg %p248
        $region78: #{tpu_custom_call.1} parent=55 // pred_check_branch
          %1638 = sbr.rel (%p1636) target = $region80
        $region79: #{tpu_custom_call.1} parent=55 // pred_region
          %s1640 = ssub.s32 16, 16
          %1641 = vsyncadd [#allocation16], %s1640
          %s1643 = sshll.u32 [#allocation20], 4
          %s1644 = int_to_ptr.vmem [resolvable:$true] %s1643
          %1646 = dma.vmem_to_hbm [thread:$0]  %s1644, 16, %s12, [#allocation16]
        $region80: #{tpu_custom_call.1} parent=55 // pred_fallthru
          _
        // Predicated region
        $region81: #{tpu_custom_call.1} parent=55 // pred_check
          %p1647 = pneg %p269
        $region82: #{tpu_custom_call.1} parent=55 // pred_check_branch
          %1649 = sbr.rel (%p1647) target = $region84
        $region83: #{tpu_custom_call.1} parent=55 // pred_region
          %s1651 = ssub.s32 16, 16
          %1652 = vsyncadd [#allocation22], %s1651
          %s1654 = sshll.u32 [#allocation21], 4
          %s1655 = int_to_ptr.vmem [resolvable:$true] %s1654
          %1657 = dma.vmem_to_hbm [thread:$0]  %s1655, 16, %s13, [#allocation22]
        $region84: #{tpu_custom_call.1} parent=55 // pred_fallthru
          _
        // Predicated region
        $region85: #{tpu_custom_call.1} parent=55 // pred_check
          %p1658 = pneg %p290
        $region86: #{tpu_custom_call.1} parent=55 // pred_check_branch
          %1660 = sbr.rel (%p1658) target = $region88
        $region87: #{tpu_custom_call.1} parent=55 // pred_region
          %s1662 = ssub.s32 16, 16
          %1663 = vsyncadd [#allocation22], %s1662
          %s1665 = sshll.u32 [#allocation23], 4
          %s1666 = int_to_ptr.vmem [resolvable:$true] %s1665
          %1668 = dma.vmem_to_hbm [thread:$0]  %s1666, 16, %s14, [#allocation22]
        $region88: #{tpu_custom_call.1} parent=55 // pred_fallthru
          _
        // Predicated region
        $region89: #{tpu_custom_call.1} parent=55 // pred_check
          %p1669 = pneg %p248
        $region90: #{tpu_custom_call.1} parent=55 // pred_check_branch
          %1671 = sbr.rel (%p1669) target = $region92
        $region91: #{tpu_custom_call.1} parent=55 // pred_region
          %1672 = dma.done [#allocation16], 16
        $region92: #{tpu_custom_call.1} parent=55 // pred_fallthru
          _
        // Predicated region
        $region93: #{tpu_custom_call.1} parent=55 // pred_check
          %p1673 = pneg %p269
        $region94: #{tpu_custom_call.1} parent=55 // pred_check_branch
          %1675 = sbr.rel (%p1673) target = $region96
        $region95: #{tpu_custom_call.1} parent=55 // pred_region
          %1676 = dma.done [#allocation22], 16
        $region96: #{tpu_custom_call.1} parent=55 // pred_fallthru
          _
        // Predicated region
        $region97: #{tpu_custom_call.1} parent=55 // pred_check
          %p1677 = pneg %p290
        $region98: #{tpu_custom_call.1} parent=55 // pred_check_branch
          %1679 = sbr.rel (%p1677) target = $region100
        $region99: #{tpu_custom_call.1} parent=55 // pred_region
          %1680 = dma.done [#allocation22], 16
        $region100: #{tpu_custom_call.1} parent=55 // pred_fallthru
          _
      $region56: #{tpu_custom_call.1} parent=5 // pred_fallthru
        _
      %p1681 = scmp.le.s32.totalorder 2, %s41
      // Predicated region
      $region101: #{tpu_custom_call.1} parent=5 // pred_check
        %p1682 = pneg %p1681
      $region102: #{tpu_custom_call.1} parent=5 // pred_check_branch
        %1684 = sbr.rel (%p1682) target = $region104
      $region103: #{tpu_custom_call.1} parent=5 // pred_region
        %s1685 = ssub.s32 %s41, 2
      $region104: #{tpu_custom_call.1} parent=5 // pred_fallthru
        _
    $region6: #{tpu_custom_call.1} parent=1 // loop_footer
      %s45 = sadd.s32 1, %s41
    $region7: #{tpu_custom_call.1} parent=1 // loop_footer_branch
      %40 = sbr.rel target = $region3
    $region8: #{tpu_custom_call.1} parent=1 // loop_exit
      _
    %1686 = vsyncpa [#allocation15], 1
    %s1687 = scalar_lea.sflag [#allocation15], 1
    %1688 = vsyncpa %s1687, 1
    %1689 = vsyncpa [#allocation18], 1
    %1690 = vsyncpa [#allocation16], 1
    %s1691 = scalar_lea.sflag [#allocation16], 1
    %1692 = vsyncpa %s1691, 1
    %1693 = vsyncpa [#allocation22], 1

</llo_original>
